<compile_context>
chip_gen: v6e
topology: v6e:2x2x1
jax: 0.10.0
libtpu: 0.0.40
codegen_flags: <defaults>
</compile_context>

<pallas_src>
import functools
import math

import jax
import jax.numpy as jnp
from jax.experimental import pallas as pl
from jax.experimental.pallas import tpu as pltpu


# ---------------------------------------------------------------------------
# Hardware-aware limits and tiling helpers
# ---------------------------------------------------------------------------
def _detect_vmem_limit():
    """3/4 of physical VMEM: ~48 MiB on v7x (64 MiB), ~96 MiB on v5e/v6e (128 MiB)."""
    try:
        cap = pltpu.get_tpu_info().vmem_capacity_bytes
    except Exception:
        cap = 64 * 1024 * 1024            # conservative default (v7x-sized)
    return int(cap * 3 // 4)


_VMEM_LIMIT = _detect_vmem_limit()
_MAX_M_TILE = 1024                        # big M tiles amortize per-step overhead
_LANE_CANDIDATES = (512, 384, 256, 128)   # 128/256-multiples for the MXU


def _round_up(x, m):
    return (x + m - 1) // m * m


def _plan_rows(dim, vmem_bytes_fn, max_tile=_MAX_M_TILE):
    """Sublane-axis tile (multiple of 8), shrunk until the kernel fits VMEM."""
    tile = min(max_tile, _round_up(dim, 8))
    while tile > 8 and vmem_bytes_fn(tile) > _VMEM_LIMIT:
        tile = max(8, (tile // 2 + 7) // 8 * 8)
    return tile, _round_up(dim, tile)


def _plan_lanes(dim):
    """Lane-axis tile: full dim if small, else a 128/256-multiple (pad if needed)."""
    if dim <= _LANE_CANDIDATES[0]:
        return dim, dim
    for c in _LANE_CANDIDATES:
        if dim % c == 0:
            return c, dim
    return 256, _round_up(dim, 256)


def _pad2(x, rows, cols):
    """Zero-pad the last two dims of x up to (rows, cols)."""
    r, c = x.shape[-2], x.shape[-1]
    if r == rows and c == cols:
        return x
    pad = [(0, 0)] * (x.ndim - 2) + [(0, rows - r), (0, cols - c)]
    return jnp.pad(x, pad)


# ---------------------------------------------------------------------------
# Kernel 1: stacked independent linears   out[p] = x[p] @ w[p] + b[p]
#           (single pallas_call for all of Q/K/V; bf16 MXU, f32 accumulate)
# ---------------------------------------------------------------------------
def _stacked_linear_kernel(x_ref, w_ref, b_ref, o_ref, acc_ref):
    @pl.when(pl.program_id(3) == 0)
    def _():
        acc_ref[...] = jnp.zeros_like(acc_ref)

    acc_ref[...] += jnp.dot(x_ref[0], w_ref[0],
                            preferred_element_type=jnp.float32)

    @pl.when(pl.program_id(3) == pl.num_programs(3) - 1)
    def _():
        o_ref[0] = (acc_ref[...] + b_ref[0]).astype(o_ref.dtype)


def stacked_linear(xs, ws, bs):
    """xs: list of (M, K); ws: list of (K, N); bs: list of (N,) -> (P, M, N) bf16."""
    P = len(xs)
    M, K = xs[0].shape
    N = ws[0].shape[1]
    x = jnp.stack([a.astype(jnp.bfloat16) for a in xs])                    # (P, M, K)
    w = jnp.stack([a.astype(jnp.bfloat16) for a in ws])                    # (P, K, N)
    b = jnp.stack([a.reshape(1, N).astype(jnp.float32) for a in bs])       # (P, 1, N)

    tn, Np = _plan_lanes(N)
    tk, Kp = _plan_lanes(K)

    def vmem_bytes(tm):
        return (2 * tm * tk * 2 + 2 * tk * tn * 2 + 2 * tm * tn * 2
                + tm * tn * 4 + 4 * tn * 4)

    tm, Mp = _plan_rows(M, vmem_bytes)
    x = _pad2(x, Mp, Kp)
    w = _pad2(w, Kp, Np)
    b = _pad2(b, 1, Np)

    grid = (P, Mp // tm, Np // tn, Kp // tk)
    out = pl.pallas_call(
        _stacked_linear_kernel,
        out_shape=jax.ShapeDtypeStruct((P, Mp, Np), jnp.bfloat16),
        grid=grid,
        in_specs=[
            pl.BlockSpec((1, tm, tk), lambda p, i, j, kk: (p, i, kk)),
            pl.BlockSpec((1, tk, tn), lambda p, i, j, kk: (p, kk, j)),
            pl.BlockSpec((1, 1, tn), lambda p, i, j, kk: (p, 0, j)),
        ],
        out_specs=pl.BlockSpec((1, tm, tn), lambda p, i, j, kk: (p, i, j)),
        scratch_shapes=[pltpu.VMEM((tm, tn), jnp.float32)],
        compiler_params=pltpu.CompilerParams(
            dimension_semantics=("parallel", "parallel", "parallel", "arbitrary"),
            vmem_limit_bytes=_VMEM_LIMIT),
        cost_estimate=pl.CostEstimate(
            flops=2 * P * M * N * K, transcendentals=0,
            bytes_accessed=2 * P * (M * K + K * N + M * N)),
    )(x, w, b)
    return out[:, :M, :N]


# ---------------------------------------------------------------------------
# Kernel 2: fused  LayerNorm(residual + x @ W + b)  (W_O projection + LN1)
# ---------------------------------------------------------------------------
def _linear_res_ln_kernel(x_ref, w_ref, b_ref, r_ref, g_ref, bb_ref, o_ref,
                          acc_ref, *, eps):
    kk = pl.program_id(1)

    @pl.when(kk == 0)
    def _():
        acc_ref[...] = jnp.zeros_like(acc_ref)

    acc_ref[...] += jnp.dot(x_ref[...], w_ref[...],
                            preferred_element_type=jnp.float32)

    @pl.when(kk == pl.num_programs(1) - 1)
    def _():
        s = acc_ref[...] + b_ref[...] + r_ref[...]
        mu = jnp.mean(s, axis=-1, keepdims=True)
        var = jnp.mean(jnp.square(s - mu), axis=-1, keepdims=True)
        o_ref[...] = ((s - mu) * jax.lax.rsqrt(var + eps) * g_ref[...]
                      + bb_ref[...]).astype(o_ref.dtype)


def linear_residual_layernorm(x, w, b, residual, gamma, beta, *, eps):
    """LayerNorm(residual + x @ w + b).  x: (M, K), w: (K, D), residual: (M, D)."""
    M, K = x.shape
    D = w.shape[1]
    tk, Kp = _plan_lanes(K)

    def vmem_bytes(tm):
        return (2 * tm * tk * 2 + 2 * tk * D * 2 + 2 * tm * D * 4
                + 2 * tm * D * 4 + tm * D * 4 + 8 * D * 4)

    tm, Mp = _plan_rows(M, vmem_bytes)
    xp = _pad2(x.astype(jnp.bfloat16), Mp, Kp)
    wp = _pad2(w.astype(jnp.bfloat16), Kp, D)
    rp = _pad2(residual.astype(jnp.float32), Mp, D)

    grid = (Mp // tm, Kp // tk)
    out = pl.pallas_call(
        functools.partial(_linear_res_ln_kernel, eps=eps),
        out_shape=jax.ShapeDtypeStruct((Mp, D), jnp.float32),
        grid=grid,
        in_specs=[
            pl.BlockSpec((tm, tk), lambda i, kk: (i, kk)),   # x (bf16)
            pl.BlockSpec((tk, D), lambda i, kk: (kk, 0)),    # w (bf16)
            pl.BlockSpec((1, D), lambda i, kk: (0, 0)),      # bias
            pl.BlockSpec((tm, D), lambda i, kk: (i, 0)),     # residual (f32)
            pl.BlockSpec((1, D), lambda i, kk: (0, 0)),      # gamma
            pl.BlockSpec((1, D), lambda i, kk: (0, 0)),      # beta
        ],
        out_specs=pl.BlockSpec((tm, D), lambda i, kk: (i, 0)),
        scratch_shapes=[pltpu.VMEM((tm, D), jnp.float32)],
        compiler_params=pltpu.CompilerParams(
            dimension_semantics=("parallel", "arbitrary"),
            vmem_limit_bytes=_VMEM_LIMIT),
        cost_estimate=pl.CostEstimate(
            flops=2 * M * D * K + 10 * M * D, transcendentals=M,
            bytes_accessed=2 * (M * K + K * D) + 4 * (2 * M * D + 3 * D)),
    )(xp, wp, b.reshape(1, D).astype(jnp.float32), rp,
      gamma.reshape(1, D).astype(jnp.float32),
      beta.reshape(1, D).astype(jnp.float32))
    return out[:M]


# ---------------------------------------------------------------------------
# Kernel 3: fused FFN  LayerNorm(x + relu(x @ W1 + b1) @ W2 + b2)
#           reduction over d_ff blocks; (M, d_ff) intermediate never hits HBM
# ---------------------------------------------------------------------------
def _ffn_res_ln_kernel(x_ref, w1_ref, b1_ref, w2_ref, b2_ref, g_ref, bb_ref,
                       o_ref, acc_ref, *, eps):
    fi = pl.program_id(1)

    @pl.when(fi == 0)
    def _():
        acc_ref[...] = jnp.zeros_like(acc_ref)

    x = x_ref[...]                                        # (tm, D) f32 (residual)
    h = jnp.dot(x.astype(jnp.bfloat16), w1_ref[...],
                preferred_element_type=jnp.float32) + b1_ref[...]
    h = jnp.maximum(h, 0.0)
    acc_ref[...] += jnp.dot(h.astype(jnp.bfloat16), w2_ref[...],
                            preferred_element_type=jnp.float32)

    @pl.when(fi == pl.num_programs(1) - 1)
    def _():
        s = acc_ref[...] + b2_ref[...] + x
        mu = jnp.mean(s, axis=-1, keepdims=True)
        var = jnp.mean(jnp.square(s - mu), axis=-1, keepdims=True)
        o_ref[...] = ((s - mu) * jax.lax.rsqrt(var + eps) * g_ref[...]
                      + bb_ref[...]).astype(o_ref.dtype)


def ffn_residual_layernorm(x, w1, b1, w2, b2, gamma, beta, *, eps):
    """LayerNorm(x + relu(x @ w1 + b1) @ w2 + b2).  x: (M, D), w1: (D, F), w2: (F, D)."""
    M, D = x.shape
    F = w1.shape[1]
    tf, Fp = _plan_lanes(F)

    def vmem_bytes(tm):
        return (2 * tm * D * 4 + 2 * D * tf * 2 + 2 * tf * D * 2
                + 2 * tm * D * 4 + tm * D * 4 + tm * tf * 4 + 8 * D * 4)

    tm, Mp = _plan_rows(M, vmem_bytes)
    xp = _pad2(x.astype(jnp.float32), Mp, D)
    w1p = _pad2(w1.astype(jnp.bfloat16), D, Fp)            # zero-padded d_ff is benign
    w2p = _pad2(w2.astype(jnp.bfloat16), Fp, D)
    b1p = _pad2(b1.reshape(1, F).astype(jnp.float32), 1, Fp)

    grid = (Mp // tm, Fp // tf)
    out = pl.pallas_call(
        functools.partial(_ffn_res_ln_kernel, eps=eps),
        out_shape=jax.ShapeDtypeStruct((Mp, D), jnp.float32),
        grid=grid,
        in_specs=[
            pl.BlockSpec((tm, D), lambda i, f: (i, 0)),   # x (also the residual)
            pl.BlockSpec((D, tf), lambda i, f: (0, f)),   # w1 (bf16)
            pl.BlockSpec((1, tf), lambda i, f: (0, f)),   # b1
            pl.BlockSpec((tf, D), lambda i, f: (f, 0)),   # w2 (bf16)
            pl.BlockSpec((1, D), lambda i, f: (0, 0)),    # b2
            pl.BlockSpec((1, D), lambda i, f: (0, 0)),    # gamma
            pl.BlockSpec((1, D), lambda i, f: (0, 0)),    # beta
        ],
        out_specs=pl.BlockSpec((tm, D), lambda i, f: (i, 0)),
        scratch_shapes=[pltpu.VMEM((tm, D), jnp.float32)],
        compiler_params=pltpu.CompilerParams(
            dimension_semantics=("parallel", "arbitrary"),
            vmem_limit_bytes=_VMEM_LIMIT),
        cost_estimate=pl.CostEstimate(
            flops=4 * M * D * F + 10 * M * D, transcendentals=M,
            bytes_accessed=8 * M * D + 4 * D * F),
    )(xp, w1p, b1p, w2p, b2.reshape(1, D).astype(jnp.float32),
      gamma.reshape(1, D).astype(jnp.float32),
      beta.reshape(1, D).astype(jnp.float32))
    return out[:M]


# ---------------------------------------------------------------------------
# Kernels 4a/4b: multi-head scaled-dot-product attention, head-major layout.
#   Heads live on the grid (no per-head Python loop); Q.K^T uses dot_general
#   contracting the last dims (no .T / XLU transpose).
# ---------------------------------------------------------------------------
def _mha_weights_kernel(q_ref, k_ref, v_ref, o_ref, w_ref, *, scale):
    # Exact softmax over the full key axis; also emits the attention weights.
    q = q_ref[0]                                           # (tq, d_k) bf16
    k = k_ref[0]                                           # (Sk, d_k) bf16
    s = jax.lax.dot_general(q, k, (((1,), (1,)), ((), ())),
                            preferred_element_type=jnp.float32) * scale
    m = jnp.max(s, axis=-1, keepdims=True)
    e = jnp.exp(s - m)
    den = jnp.sum(e, axis=-1, keepdims=True)
    r = pl.reciprocal(den, approx=True)                    # EUP slot
    r = r * (2.0 - den * r)                                # one Newton step
    p = e * r
    w_ref[0] = p.astype(w_ref.dtype)
    o_ref[0] = jnp.dot(p.astype(jnp.bfloat16), v_ref[0],
                       preferred_element_type=jnp.float32).astype(o_ref.dtype)


def _mha_flash_kernel(q_ref, k_ref, v_ref, o_ref, m_sc, l_sc, acc_sc, *, scale):
    # Flash-style: online softmax while streaming the key axis in blocks.
    ki = pl.program_id(2)

    @pl.when(ki == 0)
    def _():
        m_sc[...] = jnp.full_like(m_sc, -jnp.inf)
        l_sc[...] = jnp.zeros_like(l_sc)
        acc_sc[...] = jnp.zeros_like(acc_sc)

    q = q_ref[0]
    k = k_ref[0]
    v = v_ref[0]
    s = jax.lax.dot_general(q, k, (((1,), (1,)), ((), ())),
                            preferred_element_type=jnp.float32) * scale
    m_prev = m_sc[...]
    m_new = jnp.maximum(m_prev, jnp.max(s, axis=-1, keepdims=True))
    alpha = jnp.exp(m_prev - m_new)
    p = jnp.exp(s - m_new)
    l_sc[...] = alpha * l_sc[...] + jnp.sum(p, axis=-1, keepdims=True)
    acc_sc[...] = alpha * acc_sc[...] + jnp.dot(p.astype(jnp.bfloat16), v,
                                                preferred_element_type=jnp.float32)
    m_sc[...] = m_new

    @pl.when(ki == pl.num_programs(2) - 1)
    def _():
        den = l_sc[...]
        r = pl.reciprocal(den, approx=True)
        r = r * (2.0 - den * r)
        o_ref[0] = (acc_sc[...] * r).astype(o_ref.dtype)


def _sk_tile(Sk):
    """Key-axis block: full if small, else a 128-multiple divisor (no padding —
    padded keys would corrupt the softmax)."""
    if Sk <= 1024:
        return Sk
    for c in (512, 384, 256, 128):
        if Sk % c == 0:
            return c
    # TODO(synk): mask padded keys to -inf instead of falling back to full-Sk blocks.
    return Sk


def mha_attention(q_h, k_h, v_h, *, scale, return_weights=True,
                  weights_dtype=jnp.float32):
    """q_h: (B*H, Sq, d_k), k_h/v_h: (B*H, Sk, d_k) (head-major, bf16-castable)."""
    BH, Sq, d_k = q_h.shape
    Sk = k_h.shape[1]
    q_h = q_h.astype(jnp.bfloat16)
    k_h = k_h.astype(jnp.bfloat16)
    v_h = v_h.astype(jnp.bfloat16)
    cost = pl.CostEstimate(flops=4 * BH * Sq * Sk * d_k,
                           transcendentals=BH * Sq * Sk,
                           bytes_accessed=2 * BH * (2 * Sq + 2 * Sk) * d_k)
    wbytes = 4 if weights_dtype == jnp.float32 else 2

    if return_weights:
        def vmem_bytes(tq_):
            return (4 * tq_ * d_k * 2 + 4 * Sk * d_k * 2
                    + 2 * tq_ * Sk * wbytes + 4 * tq_ * Sk * 4)

        tq, Sq_p = _plan_rows(Sq, vmem_bytes, max_tile=256)
        if Sq_p != Sq:
            q_h = jnp.pad(q_h, ((0, 0), (0, Sq_p - Sq), (0, 0)))
        grid = (BH, Sq_p // tq)
        out, w = pl.pallas_call(
            functools.partial(_mha_weights_kernel, scale=scale),
            out_shape=(jax.ShapeDtypeStruct((BH, Sq_p, d_k), jnp.bfloat16),
                       jax.ShapeDtypeStruct((BH, Sq_p, Sk), weights_dtype)),
            grid=grid,
            in_specs=[
                pl.BlockSpec((1, tq, d_k), lambda b, i: (b, i, 0)),
                pl.BlockSpec((1, Sk, d_k), lambda b, i: (b, 0, 0)),
                pl.BlockSpec((1, Sk, d_k), lambda b, i: (b, 0, 0)),
            ],
            out_specs=[pl.BlockSpec((1, tq, d_k), lambda b, i: (b, i, 0)),
                       pl.BlockSpec((1, tq, Sk), lambda b, i: (b, i, 0))],
            compiler_params=pltpu.CompilerParams(
                dimension_semantics=("parallel", "parallel"),
                vmem_limit_bytes=_VMEM_LIMIT),
            cost_estimate=cost,
        )(q_h, k_h, v_h)
        return out[:, :Sq], w[:, :Sq]

    # Hot path: no O(S^2) weights writeback, bounded VMEM for long sequences.
    tk = _sk_tile(Sk)

    def vmem_bytes(tq_):
        return (4 * tq_ * d_k * 2 + 4 * tk * d_k * 2
                + tq_ * (d_k + 2) * 4 + 4 * tq_ * tk * 4)

    tq, Sq_p = _plan_rows(Sq, vmem_bytes, max_tile=256)
    if Sq_p != Sq:
        q_h = jnp.pad(q_h, ((0, 0), (0, Sq_p - Sq), (0, 0)))
    grid = (BH, Sq_p // tq, Sk // tk)
    out = pl.pallas_call(
        functools.partial(_mha_flash_kernel, scale=scale),
        out_shape=jax.ShapeDtypeStruct((BH, Sq_p, d_k), jnp.bfloat16),
        grid=grid,
        in_specs=[
            pl.BlockSpec((1, tq, d_k), lambda b, i, j: (b, i, 0)),
            pl.BlockSpec((1, tk, d_k), lambda b, i, j: (b, j, 0)),
            pl.BlockSpec((1, tk, d_k), lambda b, i, j: (b, j, 0)),
        ],
        out_specs=pl.BlockSpec((1, tq, d_k), lambda b, i, j: (b, i, 0)),
        scratch_shapes=[pltpu.VMEM((tq, 1), jnp.float32),
                        pltpu.VMEM((tq, 1), jnp.float32),
                        pltpu.VMEM((tq, d_k), jnp.float32)],
        compiler_params=pltpu.CompilerParams(
            dimension_semantics=("parallel", "parallel", "arbitrary"),
            vmem_limit_bytes=_VMEM_LIMIT),
        cost_estimate=cost,
    )(q_h, k_h, v_h)
    return out[:, :Sq], None


# ---------------------------------------------------------------------------
# Head layout plumbing (handled by XLA outside the kernels)
# ---------------------------------------------------------------------------
def _split_heads(x, B, S, H, d_k):
    """(B*S, H*d_k) -> (B*H, S, d_k) head-major."""
    return x.reshape(B, S, H, d_k).transpose(0, 2, 1, 3).reshape(B * H, S, d_k)


def _merge_heads(x, B, S, H, d_k):
    """(B*H, S, d_k) -> (B*S, H*d_k)."""
    return x.reshape(B, H, S, d_k).transpose(0, 2, 1, 3).reshape(B * S, H * d_k)


# ---------------------------------------------------------------------------
# EncoderLayer forward
# ---------------------------------------------------------------------------
def encoder_layer(p, q, k, v, n_heads, return_attn_weights=True, ln_eps=1e-6):
    """q: (B, Sq, D), k/v: (B, Sk, D) -> (out (B, Sq, D), attn_w (B, H, Sq, Sk) | None)."""
    B, Sq, D = q.shape
    Sk = k.shape[1]
    d_k = D // n_heads
    Mq = B * Sq

    q2 = q.reshape(Mq, D)
    k2 = k.reshape(B * Sk, D)
    v2 = v.reshape(B * Sk, D)

    # --- Q/K/V projections fused into a single pallas_call when shapes allow ---
    if q2.shape == k2.shape:
        proj = stacked_linear([q2, k2, v2],
                              [p["wq_w"], p["wk_w"], p["wv_w"]],
                              [p["wq_b"], p["wk_b"], p["wv_b"]])
        qp, kp, vp = proj[0], proj[1], proj[2]
    else:
        qp = stacked_linear([q2], [p["wq_w"]], [p["wq_b"]])[0]
        kvp = stacked_linear([k2, v2], [p["wk_w"], p["wv_w"]],
                             [p["wk_b"], p["wv_b"]])
        kp, vp = kvp[0], kvp[1]

    # --- head-major layout (B*H, S, d_k) ---
    q_h = _split_heads(qp, B, Sq, n_heads, d_k)
    k_h = _split_heads(kp, B, Sk, n_heads, d_k)
    v_h = _split_heads(vp, B, Sk, n_heads, d_k)

    attn_h, attn_w = mha_attention(q_h, k_h, v_h, scale=1.0 / math.sqrt(d_k),
                                   return_weights=return_attn_weights)
    attn2 = _merge_heads(attn_h, B, Sq, n_heads, d_k)      # (Mq, D) bf16
    if attn_w is not None:
        attn_w = attn_w.reshape(B, n_heads, Sq, Sk)

    # --- W_O projection fused with residual add + LayerNorm1 (dropout = identity) ---
    x1 = linear_residual_layernorm(attn2, p["wo_w"], p["wo_b"], q2,
                                   p["ln1_g"], p["ln1_b"], eps=ln_eps)

    # --- fused FFN + residual + LayerNorm2 (dropout = identity) ---
    out = ffn_residual_layernorm(x1, p["ff1_w"], p["ff1_b"],
                                 p["ff2_w"], p["ff2_b"],
                                 p["ln2_g"], p["ln2_b"], eps=ln_eps)
    return out.reshape(B, Sq, D), attn_w


# ---------------------------------------------------------------------------
# Pure-JAX float32 reference (for tolerance checking; bf16 MXU => loose tol)
# ---------------------------------------------------------------------------
def reference_encoder_layer(p, q, k, v, n_heads, eps=1e-6):
    B, Sq, D = q.shape
    Sk = k.shape[1]
    d_k = D // n_heads

    def ln(x, g, b):
        mu = jnp.mean(x, axis=-1, keepdims=True)
        var = jnp.mean(jnp.square(x - mu), axis=-1, keepdims=True)
        return (x - mu) * jax.lax.rsqrt(var + eps) * g + b

    def heads(x, w, b, S):
        y = x @ w + b
        return y.reshape(B, S, n_heads, d_k).transpose(0, 2, 1, 3)

    qh = heads(q, p["wq_w"], p["wq_b"], Sq)
    kh = heads(k, p["wk_w"], p["wk_b"], Sk)
    vh = heads(v, p["wv_w"], p["wv_b"], Sk)
    s = jnp.einsum("bhqd,bhkd->bhqk", qh, kh) / math.sqrt(d_k)
    w_att = jax.nn.softmax(s, axis=-1)
    att = jnp.einsum("bhqk,bhkd->bhqd", w_att, vh)
    att = att.transpose(0, 2, 1, 3).reshape(B, Sq, D)
    x1 = ln(q + att @ p["wo_w"] + p["wo_b"], p["ln1_g"], p["ln1_b"])
    ffn = jnp.maximum(x1 @ p["ff1_w"] + p["ff1_b"], 0.0) @ p["ff2_w"] + p["ff2_b"]
    out = ln(x1 + ffn, p["ln2_g"], p["ln2_b"])
    return out, w_att


# ---------------------------------------------------------------------------
# Deterministic parameter initialization (weights stored as (in, out))
# ---------------------------------------------------------------------------
def init_linear_params(key, d_in, d_out):
    bound = 1.0 / (d_in ** 0.5)
    w = jax.random.uniform(key, (d_in, d_out), jnp.float32, -bound, bound)
    b = jnp.zeros((d_out,), jnp.float32)
    return w, b


def init_layer_params(key, d_model, d_ff):
    keys = jax.random.split(key, 6)
    p = {}
    p["wq_w"], p["wq_b"] = init_linear_params(keys[0], d_model, d_model)
    p["wk_w"], p["wk_b"] = init_linear_params(keys[1], d_model, d_model)
    p["wv_w"], p["wv_b"] = init_linear_params(keys[2], d_model, d_model)
    p["wo_w"], p["wo_b"] = init_linear_params(keys[3], d_model, d_model)
    p["ff1_w"], p["ff1_b"] = init_linear_params(keys[4], d_model, d_ff)
    p["ff2_w"], p["ff2_b"] = init_linear_params(keys[5], d_ff, d_model)
    p["ln1_g"] = jnp.ones((d_model,), jnp.float32)
    p["ln1_b"] = jnp.zeros((d_model,), jnp.float32)
    p["ln2_g"] = jnp.ones((d_model,), jnp.float32)
    p["ln2_b"] = jnp.zeros((d_model,), jnp.float32)
    return p


# ---------------------------------------------------------------------------
if __name__ == "__main__":
    # Small shapes consistent with EncoderLayer.forward(q, k, v).
    B, S, d_model, n_heads, d_ff = 2, 8, 32, 4, 64

    key = jax.random.PRNGKey(0)
    k_q, k_kv, k_p = jax.random.split(key, 3)
    q = jax.random.normal(k_q, (B, S, d_model), jnp.float32)
    kv = jax.random.normal(k_kv, (B, S, d_model), jnp.float32)
    params = init_layer_params(k_p, d_model, d_ff)

    # Path 1: module-faithful path (returns attention weights).
    fwd = jax.jit(functools.partial(encoder_layer, n_heads=n_heads,
                                    return_attn_weights=True))
    out, attn_w = fwd(params, q, kv, kv)
    out = jax.block_until_ready(out)
    attn_w = jax.block_until_ready(attn_w)

    assert out.shape == (B, S, d_model)
    assert attn_w.shape == (B, n_heads, S, S)
    assert bool(jnp.all(jnp.isfinite(out)))
    assert bool(jnp.all(jnp.isfinite(attn_w)))

    ref_out, ref_w = reference_encoder_layer(params, q, kv, kv, n_heads)
    assert float(jnp.max(jnp.abs(out - ref_out))) < 0.25, "output mismatch"
    assert float(jnp.max(jnp.abs(attn_w - ref_w))) < 0.05, "attn weights mismatch"

    # Path 2: flash-style hot path (no attention-weights writeback).
    fwd_fast = jax.jit(functools.partial(encoder_layer, n_heads=n_heads,
                                         return_attn_weights=False))
    out_fast, w_none = fwd_fast(params, q, kv, kv)
    out_fast = jax.block_until_ready(out_fast)
    assert w_none is None
    assert bool(jnp.all(jnp.isfinite(out_fast)))
    assert float(jnp.max(jnp.abs(out_fast - out))) < 0.1, "flash path mismatch"

    print("KERNEL_OK")
</pallas_src>

<mosaic_0001>
module attributes {stable_mosaic.version = 11 : i64} {
  func.func @_stacked_linear_kernel(%arg0: i32, %arg1: i32, %arg2: i32, %arg3: i32, %arg4: memref<1x16x32xbf16, #tpu.memory_space<vmem>>, %arg5: memref<1x32x32xbf16, #tpu.memory_space<vmem>>, %arg6: memref<1x1x32xf32, #tpu.memory_space<vmem>>, %arg7: memref<1x16x32xbf16, #tpu.memory_space<vmem>>, %arg8: memref<16x32xf32, #tpu.memory_space<vmem>>) attributes {dimension_semantics = [#tpu.dimension_semantics<parallel>, #tpu.dimension_semantics<parallel>, #tpu.dimension_semantics<parallel>, #tpu.dimension_semantics<arbitrary>], iteration_bounds = array<i64: 3, 1, 1, 1>, scalar_prefetch = 0 : i64, scratch_operands = 1 : i64, tpu.core_type = #tpu.core_type<tc>, window_params = [{transform_indices = @transform_0, window_bounds = array<i64: 1, 16, 32>}, {transform_indices = @transform_1, window_bounds = array<i64: 1, 32, 32>}, {transform_indices = @transform_2, window_bounds = array<i64: 1, 1, 32>}, {transform_indices = @transform_3, window_bounds = array<i64: 1, 16, 32>}]} {
    %c0_i32 = arith.constant 0 : i32
    %0 = arith.cmpi eq, %arg3, %c0_i32 : i32
    %1 = arith.extui %0 : i1 to i32
    %c0_i32_0 = arith.constant 0 : i32
    %2 = arith.cmpi ne, %1, %c0_i32_0 : i32
    scf.if %2 {
      %cst_12 = arith.constant 0.000000e+00 : f32
      %14 = vector.broadcast %cst_12 : f32 to vector<16x32xf32>
      %c0_13 = arith.constant 0 : index
      %c0_14 = arith.constant 0 : index
      %15 = vector.load %arg8[%c0_13, %c0_14] : memref<16x32xf32, #tpu.memory_space<vmem>>, vector<16x32xf32>
      tpu.vector_store %arg8[%c0_13, %c0_14], %14 {strides = array<i32>} : memref<16x32xf32, #tpu.memory_space<vmem>>, vector<16x32xf32>,
    } else {
    }
    %c0 = arith.constant 0 : index
    %c0_1 = arith.constant 0 : index
    %3 = vector.load %arg8[%c0, %c0_1] : memref<16x32xf32, #tpu.memory_space<vmem>>, vector<16x32xf32>
    %c0_2 = arith.constant 0 : index
    %c0_3 = arith.constant 0 : index
    %c0_4 = arith.constant 0 : index
    %4 = vector.load %arg4[%c0_2, %c0_3, %c0_4] : memref<1x16x32xbf16, #tpu.memory_space<vmem>>, vector<1x16x32xbf16>
    %5 = vector.shape_cast %4 : vector<1x16x32xbf16> to vector<16x32xbf16>
    %c0_5 = arith.constant 0 : index
    %c0_6 = arith.constant 0 : index
    %c0_7 = arith.constant 0 : index
    %6 = vector.load %arg5[%c0_5, %c0_6, %c0_7] : memref<1x32x32xbf16, #tpu.memory_space<vmem>>, vector<1x32x32xbf16>
    %7 = vector.shape_cast %6 : vector<1x32x32xbf16> to vector<32x32xbf16>
    %cst = arith.constant dense<0.000000e+00> : vector<16x32xf32>
    %8 = tpu.matmul %5, %7, %cst {dimension_numbers = #tpu.dot_dimension_numbers<[1], [0], [0], [1], [0, 0, 1, 1], [], []>} : vector<16x32xbf16>, vector<32x32xbf16>, vector<16x32xf32> -> vector<16x32xf32>
    %9 = arith.addf %3, %8 : vector<16x32xf32>
    %c0_8 = arith.constant 0 : index
    %c0_9 = arith.constant 0 : index
    %10 = vector.load %arg8[%c0_8, %c0_9] : memref<16x32xf32, #tpu.memory_space<vmem>>, vector<16x32xf32>
    tpu.vector_store %arg8[%c0_8, %c0_9], %9 {strides = array<i32>} : memref<16x32xf32, #tpu.memory_space<vmem>>, vector<16x32xf32>,
    %c0_i32_10 = arith.constant 0 : i32
    %11 = arith.cmpi eq, %arg3, %c0_i32_10 : i32
    %12 = arith.extui %11 : i1 to i32
    %c0_i32_11 = arith.constant 0 : i32
    %13 = arith.cmpi ne, %12, %c0_i32_11 : i32
    scf.if %13 {
      %c0_12 = arith.constant 0 : index
      %c0_13 = arith.constant 0 : index
      %14 = vector.load %arg8[%c0_12, %c0_13] : memref<16x32xf32, #tpu.memory_space<vmem>>, vector<16x32xf32>
      %c0_14 = arith.constant 0 : index
      %c0_15 = arith.constant 0 : index
      %c0_16 = arith.constant 0 : index
      %15 = vector.load %arg6[%c0_14, %c0_15, %c0_16] : memref<1x1x32xf32, #tpu.memory_space<vmem>>, vector<1x1x32xf32>
      %16 = vector.shape_cast %15 : vector<1x1x32xf32> to vector<1x32xf32>
      %17 = vector.broadcast %16 : vector<1x32xf32> to vector<16x32xf32>
      %18 = arith.addf %14, %17 : vector<16x32xf32>
      %19 = arith.truncf %18 : vector<16x32xf32> to vector<16x32xbf16>
      %c0_17 = arith.constant 0 : index
      %c0_18 = arith.constant 0 : index
      %c0_19 = arith.constant 0 : index
      %20 = vector.load %arg7[%c0_17, %c0_18, %c0_19] : memref<1x16x32xbf16, #tpu.memory_space<vmem>>, vector<1x16x32xbf16>
      %21 = vector.shape_cast %20 : vector<1x16x32xbf16> to vector<16x32xbf16>
      %22 = vector.shape_cast %19 : vector<16x32xbf16> to vector<1x16x32xbf16>
      tpu.vector_store %arg7[%c0_17, %c0_18, %c0_19], %22 {strides = array<i32>} : memref<1x16x32xbf16, #tpu.memory_space<vmem>>, vector<1x16x32xbf16>,
    } else {
    }
    return
  }
  func.func @transform_0(%arg0: i32, %arg1: i32, %arg2: i32, %arg3: i32) -> (i32, i32, i32) {
    %c0_i32 = arith.constant 0 : i32
    return %arg0, %arg1, %arg3 : i32, i32, i32
  }
  func.func @transform_1(%arg0: i32, %arg1: i32, %arg2: i32, %arg3: i32) -> (i32, i32, i32) {
    %c0_i32 = arith.constant 0 : i32
    return %arg0, %arg3, %arg2 : i32, i32, i32
  }
  func.func @transform_2(%arg0: i32, %arg1: i32, %arg2: i32, %arg3: i32) -> (i32, i32, i32) {
    %c0_i32 = arith.constant 0 : i32
    %c0_i32_0 = arith.constant 0 : i32
    return %arg0, %c0_i32, %arg2 : i32, i32, i32
  }
  func.func @transform_3(%arg0: i32, %arg1: i32, %arg2: i32, %arg3: i32) -> (i32, i32, i32) {
    %c0_i32 = arith.constant 0 : i32
    return %arg0, %arg1, %arg2 : i32, i32, i32
  }
}

module attributes {stable_mosaic.version = 11 : i64} {
  func.func @_mha_weights_kernel(%arg0: i32, %arg1: i32, %arg2: memref<1x8x8xbf16, #tpu.memory_space<vmem>>, %arg3: memref<1x8x8xbf16, #tpu.memory_space<vmem>>, %arg4: memref<1x8x8xbf16, #tpu.memory_space<vmem>>, %arg5: memref<1x8x8xbf16, #tpu.memory_space<vmem>>, %arg6: memref<1x8x8xf32, #tpu.memory_space<vmem>>) attributes {dimension_semantics = [#tpu.dimension_semantics<parallel>, #tpu.dimension_semantics<parallel>], iteration_bounds = array<i64: 8, 1>, scalar_prefetch = 0 : i64, scratch_operands = 0 : i64, tpu.core_type = #tpu.core_type<tc>, window_params = [{transform_indices = @transform_0, window_bounds = array<i64: 1, 8, 8>}, {transform_indices = @transform_1, window_bounds = array<i64: 1, 8, 8>}, {transform_indices = @transform_2, window_bounds = array<i64: 1, 8, 8>}, {transform_indices = @transform_3, window_bounds = array<i64: 1, 8, 8>}, {transform_indices = @transform_4, window_bounds = array<i64: 1, 8, 8>}]} {
    %c0 = arith.constant 0 : index
    %c0_0 = arith.constant 0 : index
    %c0_1 = arith.constant 0 : index
    %0 = vector.load %arg2[%c0, %c0_0, %c0_1] : memref<1x8x8xbf16, #tpu.memory_space<vmem>>, vector<1x8x8xbf16>
    %1 = vector.shape_cast %0 : vector<1x8x8xbf16> to vector<8x8xbf16>
    %c0_2 = arith.constant 0 : index
    %c0_3 = arith.constant 0 : index
    %c0_4 = arith.constant 0 : index
    %2 = vector.load %arg3[%c0_2, %c0_3, %c0_4] : memref<1x8x8xbf16, #tpu.memory_space<vmem>>, vector<1x8x8xbf16>
    %3 = vector.shape_cast %2 : vector<1x8x8xbf16> to vector<8x8xbf16>
    %cst = arith.constant dense<0.000000e+00> : vector<8x8xf32>
    %4 = tpu.matmul %1, %3, %cst {dimension_numbers = #tpu.dot_dimension_numbers<[1], [1], [0], [0], [0, 0, 1, 0], [], []>} : vector<8x8xbf16>, vector<8x8xbf16>, vector<8x8xf32> -> vector<8x8xf32>
    %cst_5 = arith.constant 0.353553385 : f32
    %5 = vector.broadcast %cst_5 : f32 to vector<8x8xf32>
    %6 = arith.mulf %4, %5 : vector<8x8xf32>
    %cst_6 = arith.constant dense<0xFF800000> : vector<8xf32>
    %7 = vector.multi_reduction <maximumf>, %6, %cst_6 [1] : vector<8x8xf32> to vector<8xf32>
    %8 = vector.shape_cast %7 : vector<8xf32> to vector<8x1xf32>
    %9 = vector.broadcast %8 : vector<8x1xf32> to vector<8x8xf32>
    %10 = arith.subf %6, %9 : vector<8x8xf32>
    %11 = math.exp %10 : vector<8x8xf32>
    %cst_7 = arith.constant dense<0.000000e+00> : vector<8xf32>
    %12 = vector.multi_reduction <add>, %11, %cst_7 [1] : vector<8x8xf32> to vector<8xf32>
    %13 = vector.shape_cast %12 : vector<8xf32> to vector<8x1xf32>
    %14 = tpu.reciprocal %13 {approx = true} : vector<8x1xf32> -> vector<8x1xf32>
    %15 = arith.mulf %13, %14 : vector<8x1xf32>
    %cst_8 = arith.constant 2.000000e+00 : f32
    %16 = vector.broadcast %cst_8 : f32 to vector<8x1xf32>
    %17 = arith.subf %16, %15 : vector<8x1xf32>
    %18 = arith.mulf %14, %17 : vector<8x1xf32>
    %19 = vector.broadcast %18 : vector<8x1xf32> to vector<8x8xf32>
    %20 = arith.mulf %11, %19 : vector<8x8xf32>
    %c0_9 = arith.constant 0 : index
    %c0_10 = arith.constant 0 : index
    %c0_11 = arith.constant 0 : index
    %21 = vector.load %arg6[%c0_9, %c0_10, %c0_11] : memref<1x8x8xf32, #tpu.memory_space<vmem>>, vector<1x8x8xf32>
    %22 = vector.shape_cast %21 : vector<1x8x8xf32> to vector<8x8xf32>
    %23 = vector.shape_cast %20 : vector<8x8xf32> to vector<1x8x8xf32>
    tpu.vector_store %arg6[%c0_9, %c0_10, %c0_11], %23 {strides = array<i32>} : memref<1x8x8xf32, #tpu.memory_space<vmem>>, vector<1x8x8xf32>,
    %24 = arith.truncf %20 : vector<8x8xf32> to vector<8x8xbf16>
    %c0_12 = arith.constant 0 : index
    %c0_13 = arith.constant 0 : index
    %c0_14 = arith.constant 0 : index
    %25 = vector.load %arg4[%c0_12, %c0_13, %c0_14] : memref<1x8x8xbf16, #tpu.memory_space<vmem>>, vector<1x8x8xbf16>
    %26 = vector.shape_cast %25 : vector<1x8x8xbf16> to vector<8x8xbf16>
    %cst_15 = arith.constant dense<0.000000e+00> : vector<8x8xf32>
    %27 = tpu.matmul %24, %26, %cst_15 {dimension_numbers = #tpu.dot_dimension_numbers<[1], [0], [0], [1], [0, 0, 1, 1], [], []>} : vector<8x8xbf16>, vector<8x8xbf16>, vector<8x8xf32> -> vector<8x8xf32>
    %28 = arith.truncf %27 : vector<8x8xf32> to vector<8x8xbf16>
    %c0_16 = arith.constant 0 : index
    %c0_17 = arith.constant 0 : index
    %c0_18 = arith.constant 0 : index
    %29 = vector.load %arg5[%c0_16, %c0_17, %c0_18] : memref<1x8x8xbf16, #tpu.memory_space<vmem>>, vector<1x8x8xbf16>
    %30 = vector.shape_cast %29 : vector<1x8x8xbf16> to vector<8x8xbf16>
    %31 = vector.shape_cast %28 : vector<8x8xbf16> to vector<1x8x8xbf16>
    tpu.vector_store %arg5[%c0_16, %c0_17, %c0_18], %31 {strides = array<i32>} : memref<1x8x8xbf16, #tpu.memory_space<vmem>>, vector<1x8x8xbf16>,
    return
  }
  func.func @transform_0(%arg0: i32, %arg1: i32) -> (i32, i32, i32) {
    %c0_i32 = arith.constant 0 : i32
    %c0_i32_0 = arith.constant 0 : i32
    return %arg0, %arg1, %c0_i32 : i32, i32, i32
  }
  func.func @transform_1(%arg0: i32, %arg1: i32) -> (i32, i32, i32) {
    %c0_i32 = arith.constant 0 : i32
    %c0_i32_0 = arith.constant 0 : i32
    %c0_i32_1 = arith.constant 0 : i32
    return %arg0, %c0_i32, %c0_i32_0 : i32, i32, i32
  }
  func.func @transform_2(%arg0: i32, %arg1: i32) -> (i32, i32, i32) {
    %c0_i32 = arith.constant 0 : i32
    %c0_i32_0 = arith.constant 0 : i32
    %c0_i32_1 = arith.constant 0 : i32
    return %arg0, %c0_i32, %c0_i32_0 : i32, i32, i32
  }
  func.func @transform_3(%arg0: i32, %arg1: i32) -> (i32, i32, i32) {
    %c0_i32 = arith.constant 0 : i32
    %c0_i32_0 = arith.constant 0 : i32
    return %arg0, %arg1, %c0_i32 : i32, i32, i32
  }
  func.func @transform_4(%arg0: i32, %arg1: i32) -> (i32, i32, i32) {
    %c0_i32 = arith.constant 0 : i32
    %c0_i32_0 = arith.constant 0 : i32
    return %arg0, %arg1, %c0_i32 : i32, i32, i32
  }
}

module attributes {stable_mosaic.version = 11 : i64} {
  func.func @_linear_res_ln_kernel(%arg0: i32, %arg1: i32, %arg2: memref<16x32xbf16, #tpu.memory_space<vmem>>, %arg3: memref<32x32xbf16, #tpu.memory_space<vmem>>, %arg4: memref<1x32xf32, #tpu.memory_space<vmem>>, %arg5: memref<16x32xf32, #tpu.memory_space<vmem>>, %arg6: memref<1x32xf32, #tpu.memory_space<vmem>>, %arg7: memref<1x32xf32, #tpu.memory_space<vmem>>, %arg8: memref<16x32xf32, #tpu.memory_space<vmem>>, %arg9: memref<16x32xf32, #tpu.memory_space<vmem>>) attributes {dimension_semantics = [#tpu.dimension_semantics<parallel>, #tpu.dimension_semantics<arbitrary>], iteration_bounds = array<i64: 1, 1>, scalar_prefetch = 0 : i64, scratch_operands = 1 : i64, tpu.core_type = #tpu.core_type<tc>, window_params = [{transform_indices = @transform_0, window_bounds = array<i64: 16, 32>}, {transform_indices = @transform_1, window_bounds = array<i64: 32, 32>}, {pipeline_mode = #tpu.pipeline_mode<synchronous>, transform_indices = @transform_2, window_bounds = array<i64: 1, 32>}, {transform_indices = @transform_3, window_bounds = array<i64: 16, 32>}, {pipeline_mode = #tpu.pipeline_mode<synchronous>, transform_indices = @transform_4, window_bounds = array<i64: 1, 32>}, {pipeline_mode = #tpu.pipeline_mode<synchronous>, transform_indices = @transform_5, window_bounds = array<i64: 1, 32>}, {transform_indices = @transform_6, window_bounds = array<i64: 16, 32>}]} {
    %c0_i32 = arith.constant 0 : i32
    %0 = arith.cmpi eq, %arg1, %c0_i32 : i32
    %1 = arith.extui %0 : i1 to i32
    %c0_i32_0 = arith.constant 0 : i32
    %2 = arith.cmpi ne, %1, %c0_i32_0 : i32
    scf.if %2 {
      %cst_10 = arith.constant 0.000000e+00 : f32
      %12 = vector.broadcast %cst_10 : f32 to vector<16x32xf32>
      %c0_11 = arith.constant 0 : index
      %c0_12 = arith.constant 0 : index
      %13 = vector.load %arg9[%c0_11, %c0_12] : memref<16x32xf32, #tpu.memory_space<vmem>>, vector<16x32xf32>
      tpu.vector_store %arg9[%c0_11, %c0_12], %12 {strides = array<i32>} : memref<16x32xf32, #tpu.memory_space<vmem>>, vector<16x32xf32>,
    } else {
    }
    %c0 = arith.constant 0 : index
    %c0_1 = arith.constant 0 : index
    %3 = vector.load %arg9[%c0, %c0_1] : memref<16x32xf32, #tpu.memory_space<vmem>>, vector<16x32xf32>
    %c0_2 = arith.constant 0 : index
    %c0_3 = arith.constant 0 : index
    %4 = vector.load %arg2[%c0_2, %c0_3] : memref<16x32xbf16, #tpu.memory_space<vmem>>, vector<16x32xbf16>
    %c0_4 = arith.constant 0 : index
    %c0_5 = arith.constant 0 : index
    %5 = vector.load %arg3[%c0_4, %c0_5] : memref<32x32xbf16, #tpu.memory_space<vmem>>, vector<32x32xbf16>
    %cst = arith.constant dense<0.000000e+00> : vector<16x32xf32>
    %6 = tpu.matmul %4, %5, %cst {dimension_numbers = #tpu.dot_dimension_numbers<[1], [0], [0], [1], [0, 0, 1, 1], [], []>} : vector<16x32xbf16>, vector<32x32xbf16>, vector<16x32xf32> -> vector<16x32xf32>
    %7 = arith.addf %3, %6 : vector<16x32xf32>
    %c0_6 = arith.constant 0 : index
    %c0_7 = arith.constant 0 : index
    %8 = vector.load %arg9[%c0_6, %c0_7] : memref<16x32xf32, #tpu.memory_space<vmem>>, vector<16x32xf32>
    tpu.vector_store %arg9[%c0_6, %c0_7], %7 {strides = array<i32>} : memref<16x32xf32, #tpu.memory_space<vmem>>, vector<16x32xf32>,
    %c0_i32_8 = arith.constant 0 : i32
    %9 = arith.cmpi eq, %arg1, %c0_i32_8 : i32
    %10 = arith.extui %9 : i1 to i32
    %c0_i32_9 = arith.constant 0 : i32
    %11 = arith.cmpi ne, %10, %c0_i32_9 : i32
    scf.if %11 {
      %c0_10 = arith.constant 0 : index
      %c0_11 = arith.constant 0 : index
      %12 = vector.load %arg9[%c0_10, %c0_11] : memref<16x32xf32, #tpu.memory_space<vmem>>, vector<16x32xf32>
      %c0_12 = arith.constant 0 : index
      %c0_13 = arith.constant 0 : index
      %13 = vector.load %arg4[%c0_12, %c0_13] : memref<1x32xf32, #tpu.memory_space<vmem>>, vector<1x32xf32>
      %14 = vector.broadcast %13 : vector<1x32xf32> to vector<16x32xf32>
      %15 = arith.addf %12, %14 : vector<16x32xf32>
      %c0_14 = arith.constant 0 : index
      %c0_15 = arith.constant 0 : index
      %16 = vector.load %arg5[%c0_14, %c0_15] : memref<16x32xf32, #tpu.memory_space<vmem>>, vector<16x32xf32>
      %17 = arith.addf %15, %16 : vector<16x32xf32>
      %cst_16 = arith.constant dense<0.000000e+00> : vector<16xf32>
      %18 = vector.multi_reduction <add>, %17, %cst_16 [1] : vector<16x32xf32> to vector<16xf32>
      %19 = vector.shape_cast %18 : vector<16xf32> to vector<16x1xf32>
      %cst_17 = arith.constant 3.200000e+01 : f32
      %20 = vector.broadcast %cst_17 : f32 to vector<16x1xf32>
      %21 = arith.divf %19, %20 : vector<16x1xf32>
      %22 = vector.broadcast %21 : vector<16x1xf32> to vector<16x32xf32>
      %23 = arith.subf %17, %22 : vector<16x32xf32>
      %24 = arith.mulf %23, %23 : vector<16x32xf32>
      %cst_18 = arith.constant dense<0.000000e+00> : vector<16xf32>
      %25 = vector.multi_reduction <add>, %24, %cst_18 [1] : vector<16x32xf32> to vector<16xf32>
      %26 = vector.shape_cast %25 : vector<16xf32> to vector<16x1xf32>
      %cst_19 = arith.constant 3.200000e+01 : f32
      %27 = vector.broadcast %cst_19 : f32 to vector<16x1xf32>
      %28 = arith.divf %26, %27 : vector<16x1xf32>
      %29 = vector.broadcast %21 : vector<16x1xf32> to vector<16x32xf32>
      %30 = arith.subf %17, %29 : vector<16x32xf32>
      %cst_20 = arith.constant 9.99999997E-7 : f32
      %31 = vector.broadcast %cst_20 : f32 to vector<16x1xf32>
      %32 = arith.addf %28, %31 : vector<16x1xf32>
      %33 = math.rsqrt %32 : vector<16x1xf32>
      %34 = vector.broadcast %33 : vector<16x1xf32> to vector<16x32xf32>
      %35 = arith.mulf %30, %34 : vector<16x32xf32>
      %c0_21 = arith.constant 0 : index
      %c0_22 = arith.constant 0 : index
      %36 = vector.load %arg6[%c0_21, %c0_22] : memref<1x32xf32, #tpu.memory_space<vmem>>, vector<1x32xf32>
      %37 = vector.broadcast %36 : vector<1x32xf32> to vector<16x32xf32>
      %38 = arith.mulf %35, %37 : vector<16x32xf32>
      %c0_23 = arith.constant 0 : index
      %c0_24 = arith.constant 0 : index
      %39 = vector.load %arg7[%c0_23, %c0_24] : memref<1x32xf32, #tpu.memory_space<vmem>>, vector<1x32xf32>
      %40 = vector.broadcast %39 : vector<1x32xf32> to vector<16x32xf32>
      %41 = arith.addf %38, %40 : vector<16x32xf32>
      %c0_25 = arith.constant 0 : index
      %c0_26 = arith.constant 0 : index
      %42 = vector.load %arg8[%c0_25, %c0_26] : memref<16x32xf32, #tpu.memory_space<vmem>>, vector<16x32xf32>
      tpu.vector_store %arg8[%c0_25, %c0_26], %41 {strides = array<i32>} : memref<16x32xf32, #tpu.memory_space<vmem>>, vector<16x32xf32>,
    } else {
    }
    return
  }
  func.func @transform_0(%arg0: i32, %arg1: i32) -> (i32, i32) {
    %c0_i32 = arith.constant 0 : i32
    return %arg0, %arg1 : i32, i32
  }
  func.func @transform_1(%arg0: i32, %arg1: i32) -> (i32, i32) {
    %c0_i32 = arith.constant 0 : i32
    %c0_i32_0 = arith.constant 0 : i32
    return %arg1, %c0_i32 : i32, i32
  }
  func.func @transform_2(%arg0: i32, %arg1: i32) -> (i32, i32) {
    %c0_i32 = arith.constant 0 : i32
    %c0_i32_0 = arith.constant 0 : i32
    %c0_i32_1 = arith.constant 0 : i32
    return %c0_i32, %c0_i32_0 : i32, i32
  }
  func.func @transform_3(%arg0: i32, %arg1: i32) -> (i32, i32) {
    %c0_i32 = arith.constant 0 : i32
    %c0_i32_0 = arith.constant 0 : i32
    return %arg0, %c0_i32 : i32, i32
  }
  func.func @transform_4(%arg0: i32, %arg1: i32) -> (i32, i32) {
    %c0_i32 = arith.constant 0 : i32
    %c0_i32_0 = arith.constant 0 : i32
    %c0_i32_1 = arith.constant 0 : i32
    return %c0_i32, %c0_i32_0 : i32, i32
  }
  func.func @transform_5(%arg0: i32, %arg1: i32) -> (i32, i32) {
    %c0_i32 = arith.constant 0 : i32
    %c0_i32_0 = arith.constant 0 : i32
    %c0_i32_1 = arith.constant 0 : i32
    return %c0_i32, %c0_i32_0 : i32, i32
  }
  func.func @transform_6(%arg0: i32, %arg1: i32) -> (i32, i32) {
    %c0_i32 = arith.constant 0 : i32
    %c0_i32_0 = arith.constant 0 : i32
    return %arg0, %c0_i32 : i32, i32
  }
}

module attributes {stable_mosaic.version = 11 : i64} {
  func.func @_ffn_res_ln_kernel(%arg0: i32, %arg1: i32, %arg2: memref<16x32xf32, #tpu.memory_space<vmem>>, %arg3: memref<32x64xbf16, #tpu.memory_space<vmem>>, %arg4: memref<1x64xf32, #tpu.memory_space<vmem>>, %arg5: memref<64x32xbf16, #tpu.memory_space<vmem>>, %arg6: memref<1x32xf32, #tpu.memory_space<vmem>>, %arg7: memref<1x32xf32, #tpu.memory_space<vmem>>, %arg8: memref<1x32xf32, #tpu.memory_space<vmem>>, %arg9: memref<16x32xf32, #tpu.memory_space<vmem>>, %arg10: memref<16x32xf32, #tpu.memory_space<vmem>>) attributes {dimension_semantics = [#tpu.dimension_semantics<parallel>, #tpu.dimension_semantics<arbitrary>], iteration_bounds = array<i64: 1, 1>, scalar_prefetch = 0 : i64, scratch_operands = 1 : i64, tpu.core_type = #tpu.core_type<tc>, window_params = [{transform_indices = @transform_0, window_bounds = array<i64: 16, 32>}, {transform_indices = @transform_1, window_bounds = array<i64: 32, 64>}, {transform_indices = @transform_2, window_bounds = array<i64: 1, 64>}, {transform_indices = @transform_3, window_bounds = array<i64: 64, 32>}, {pipeline_mode = #tpu.pipeline_mode<synchronous>, transform_indices = @transform_4, window_bounds = array<i64: 1, 32>}, {pipeline_mode = #tpu.pipeline_mode<synchronous>, transform_indices = @transform_5, window_bounds = array<i64: 1, 32>}, {pipeline_mode = #tpu.pipeline_mode<synchronous>, transform_indices = @transform_6, window_bounds = array<i64: 1, 32>}, {transform_indices = @transform_7, window_bounds = array<i64: 16, 32>}]} {
    %c0_i32 = arith.constant 0 : i32
    %0 = arith.cmpi eq, %arg1, %c0_i32 : i32
    %1 = arith.extui %0 : i1 to i32
    %c0_i32_0 = arith.constant 0 : i32
    %2 = arith.cmpi ne, %1, %c0_i32_0 : i32
    scf.if %2 {
      %cst_16 = arith.constant 0.000000e+00 : f32
      %21 = vector.broadcast %cst_16 : f32 to vector<16x32xf32>
      %c0_17 = arith.constant 0 : index
      %c0_18 = arith.constant 0 : index
      %22 = vector.load %arg10[%c0_17, %c0_18] : memref<16x32xf32, #tpu.memory_space<vmem>>, vector<16x32xf32>
      tpu.vector_store %arg10[%c0_17, %c0_18], %21 {strides = array<i32>} : memref<16x32xf32, #tpu.memory_space<vmem>>, vector<16x32xf32>,
    } else {
    }
    %c0 = arith.constant 0 : index
    %c0_1 = arith.constant 0 : index
    %3 = vector.load %arg2[%c0, %c0_1] : memref<16x32xf32, #tpu.memory_space<vmem>>, vector<16x32xf32>
    %4 = arith.truncf %3 : vector<16x32xf32> to vector<16x32xbf16>
    %c0_2 = arith.constant 0 : index
    %c0_3 = arith.constant 0 : index
    %5 = vector.load %arg3[%c0_2, %c0_3] : memref<32x64xbf16, #tpu.memory_space<vmem>>, vector<32x64xbf16>
    %cst = arith.constant dense<0.000000e+00> : vector<16x64xf32>
    %6 = tpu.matmul %4, %5, %cst {dimension_numbers = #tpu.dot_dimension_numbers<[1], [0], [0], [1], [0, 0, 1, 1], [], []>} : vector<16x32xbf16>, vector<32x64xbf16>, vector<16x64xf32> -> vector<16x64xf32>
    %c0_4 = arith.constant 0 : index
    %c0_5 = arith.constant 0 : index
    %7 = vector.load %arg4[%c0_4, %c0_5] : memref<1x64xf32, #tpu.memory_space<vmem>>, vector<1x64xf32>
    %8 = vector.broadcast %7 : vector<1x64xf32> to vector<16x64xf32>
    %9 = arith.addf %6, %8 : vector<16x64xf32>
    %cst_6 = arith.constant 0.000000e+00 : f32
    %10 = vector.broadcast %cst_6 : f32 to vector<16x64xf32>
    %11 = arith.maximumf %9, %10 : vector<16x64xf32>
    %c0_7 = arith.constant 0 : index
    %c0_8 = arith.constant 0 : index
    %12 = vector.load %arg10[%c0_7, %c0_8] : memref<16x32xf32, #tpu.memory_space<vmem>>, vector<16x32xf32>
    %13 = arith.truncf %11 : vector<16x64xf32> to vector<16x64xbf16>
    %c0_9 = arith.constant 0 : index
    %c0_10 = arith.constant 0 : index
    %14 = vector.load %arg5[%c0_9, %c0_10] : memref<64x32xbf16, #tpu.memory_space<vmem>>, vector<64x32xbf16>
    %cst_11 = arith.constant dense<0.000000e+00> : vector<16x32xf32>
    %15 = tpu.matmul %13, %14, %cst_11 {dimension_numbers = #tpu.dot_dimension_numbers<[1], [0], [0], [1], [0, 0, 1, 1], [], []>} : vector<16x64xbf16>, vector<64x32xbf16>, vector<16x32xf32> -> vector<16x32xf32>
    %16 = arith.addf %12, %15 : vector<16x32xf32>
    %c0_12 = arith.constant 0 : index
    %c0_13 = arith.constant 0 : index
    %17 = vector.load %arg10[%c0_12, %c0_13] : memref<16x32xf32, #tpu.memory_space<vmem>>, vector<16x32xf32>
    tpu.vector_store %arg10[%c0_12, %c0_13], %16 {strides = array<i32>} : memref<16x32xf32, #tpu.memory_space<vmem>>, vector<16x32xf32>,
    %c0_i32_14 = arith.constant 0 : i32
    %18 = arith.cmpi eq, %arg1, %c0_i32_14 : i32
    %19 = arith.extui %18 : i1 to i32
    %c0_i32_15 = arith.constant 0 : i32
    %20 = arith.cmpi ne, %19, %c0_i32_15 : i32
    scf.if %20 {
      %c0_16 = arith.constant 0 : index
      %c0_17 = arith.constant 0 : index
      %21 = vector.load %arg10[%c0_16, %c0_17] : memref<16x32xf32, #tpu.memory_space<vmem>>, vector<16x32xf32>
      %c0_18 = arith.constant 0 : index
      %c0_19 = arith.constant 0 : index
      %22 = vector.load %arg6[%c0_18, %c0_19] : memref<1x32xf32, #tpu.memory_space<vmem>>, vector<1x32xf32>
      %23 = vector.broadcast %22 : vector<1x32xf32> to vector<16x32xf32>
      %24 = arith.addf %21, %23 : vector<16x32xf32>
      %25 = arith.addf %24, %3 : vector<16x32xf32>
      %cst_20 = arith.constant dense<0.000000e+00> : vector<16xf32>
      %26 = vector.multi_reduction <add>, %25, %cst_20 [1] : vector<16x32xf32> to vector<16xf32>
      %27 = vector.shape_cast %26 : vector<16xf32> to vector<16x1xf32>
      %cst_21 = arith.constant 3.200000e+01 : f32
      %28 = vector.broadcast %cst_21 : f32 to vector<16x1xf32>
      %29 = arith.divf %27, %28 : vector<16x1xf32>
      %30 = vector.broadcast %29 : vector<16x1xf32> to vector<16x32xf32>
      %31 = arith.subf %25, %30 : vector<16x32xf32>
      %32 = arith.mulf %31, %31 : vector<16x32xf32>
      %cst_22 = arith.constant dense<0.000000e+00> : vector<16xf32>
      %33 = vector.multi_reduction <add>, %32, %cst_22 [1] : vector<16x32xf32> to vector<16xf32>
      %34 = vector.shape_cast %33 : vector<16xf32> to vector<16x1xf32>
      %cst_23 = arith.constant 3.200000e+01 : f32
      %35 = vector.broadcast %cst_23 : f32 to vector<16x1xf32>
      %36 = arith.divf %34, %35 : vector<16x1xf32>
      %37 = vector.broadcast %29 : vector<16x1xf32> to vector<16x32xf32>
      %38 = arith.subf %25, %37 : vector<16x32xf32>
      %cst_24 = arith.constant 9.99999997E-7 : f32
      %39 = vector.broadcast %cst_24 : f32 to vector<16x1xf32>
      %40 = arith.addf %36, %39 : vector<16x1xf32>
      %41 = math.rsqrt %40 : vector<16x1xf32>
      %42 = vector.broadcast %41 : vector<16x1xf32> to vector<16x32xf32>
      %43 = arith.mulf %38, %42 : vector<16x32xf32>
      %c0_25 = arith.constant 0 : index
      %c0_26 = arith.constant 0 : index
      %44 = vector.load %arg7[%c0_25, %c0_26] : memref<1x32xf32, #tpu.memory_space<vmem>>, vector<1x32xf32>
      %45 = vector.broadcast %44 : vector<1x32xf32> to vector<16x32xf32>
      %46 = arith.mulf %43, %45 : vector<16x32xf32>
      %c0_27 = arith.constant 0 : index
      %c0_28 = arith.constant 0 : index
      %47 = vector.load %arg8[%c0_27, %c0_28] : memref<1x32xf32, #tpu.memory_space<vmem>>, vector<1x32xf32>
      %48 = vector.broadcast %47 : vector<1x32xf32> to vector<16x32xf32>
      %49 = arith.addf %46, %48 : vector<16x32xf32>
      %c0_29 = arith.constant 0 : index
      %c0_30 = arith.constant 0 : index
      %50 = vector.load %arg9[%c0_29, %c0_30] : memref<16x32xf32, #tpu.memory_space<vmem>>, vector<16x32xf32>
      tpu.vector_store %arg9[%c0_29, %c0_30], %49 {strides = array<i32>} : memref<16x32xf32, #tpu.memory_space<vmem>>, vector<16x32xf32>,
    } else {
    }
    return
  }
  func.func @transform_0(%arg0: i32, %arg1: i32) -> (i32, i32) {
    %c0_i32 = arith.constant 0 : i32
    %c0_i32_0 = arith.constant 0 : i32
    return %arg0, %c0_i32 : i32, i32
  }
  func.func @transform_1(%arg0: i32, %arg1: i32) -> (i32, i32) {
    %c0_i32 = arith.constant 0 : i32
    %c0_i32_0 = arith.constant 0 : i32
    return %c0_i32, %arg1 : i32, i32
  }
  func.func @transform_2(%arg0: i32, %arg1: i32) -> (i32, i32) {
    %c0_i32 = arith.constant 0 : i32
    %c0_i32_0 = arith.constant 0 : i32
    return %c0_i32, %arg1 : i32, i32
  }
  func.func @transform_3(%arg0: i32, %arg1: i32) -> (i32, i32) {
    %c0_i32 = arith.constant 0 : i32
    %c0_i32_0 = arith.constant 0 : i32
    return %arg1, %c0_i32 : i32, i32
  }
  func.func @transform_4(%arg0: i32, %arg1: i32) -> (i32, i32) {
    %c0_i32 = arith.constant 0 : i32
    %c0_i32_0 = arith.constant 0 : i32
    %c0_i32_1 = arith.constant 0 : i32
    return %c0_i32, %c0_i32_0 : i32, i32
  }
  func.func @transform_5(%arg0: i32, %arg1: i32) -> (i32, i32) {
    %c0_i32 = arith.constant 0 : i32
    %c0_i32_0 = arith.constant 0 : i32
    %c0_i32_1 = arith.constant 0 : i32
    return %c0_i32, %c0_i32_0 : i32, i32
  }
  func.func @transform_6(%arg0: i32, %arg1: i32) -> (i32, i32) {
    %c0_i32 = arith.constant 0 : i32
    %c0_i32_0 = arith.constant 0 : i32
    %c0_i32_1 = arith.constant 0 : i32
    return %c0_i32, %c0_i32_0 : i32, i32
  }
  func.func @transform_7(%arg0: i32, %arg1: i32) -> (i32, i32) {
    %c0_i32 = arith.constant 0 : i32
    %c0_i32_0 = arith.constant 0 : i32
    return %arg0, %c0_i32 : i32, i32
  }
}

</mosaic_0001>

<llo_original>
// kernel: squeeze.3
$region0: #{squeeze.3}
  %s0 = inlined_call_operand.vmem [shape: bf16[1,16,32], index: 0, kind: input, shape index: {}]
  %s1 = inlined_call_operand.vmem [shape: bf16[2,8,4,8], index: 1, kind: output, shape index: {}]
  $region1: #{squeeze.3} parent=0
    #allocation0 [shape = 'u8[65536]{0}', space=vmem, size = 0x10000, scoped, tag = 'scoped mem for output reshape']
    #allocation1 [shape = 'u8[8192]{0}', space=vmem, size = 0x2000, scoped, tag = 'scoped mem for input reshape']
    %s3 = smul.u32 4, 2
    %s4 = sshll.u32 1, %s3
    %s5 = ssub.s32 %s4, 1
    %s6 = scalar_lea.vmem %s0, 4
    %s7 = sshrl.u32 %s5, 1
    %s8 = sor.u32 %s5, %s7
    %s9 = sand.u32 %s8, 85
    %s10 = sshrl.u32 %s9, 1
    %s11 = sor.u32 %s9, %s10
    %s12 = sand.u32 51, %s11
    %s13 = sshrl.u32 %s12, 2
    %s14 = sor.u32 %s12, %s13
    %s15 = sand.u32 15, %s14
    %v16 = vld [vmem:[%s6] sm:%s15]
    %v17 = vunpack.c.l.bf16 %v16
    %v18 = vunpack.c.h.bf16 %v16
    %s19 = scalar_lea.vmem [#allocation1], 8
    %20 = vst [vmem:[%s19] sm:%s5] %v17
    %s21 = sshrl.u32 %s5, 1
    %s22 = sor.u32 %s5, %s21
    %s23 = sand.u32 %s22, 85
    %s24 = sshrl.u32 %s23, 1
    %s25 = sor.u32 %s23, %s24
    %s26 = sand.u32 51, %s25
    %s27 = sshrl.u32 %s26, 2
    %s28 = sor.u32 %s26, %s27
    %s29 = sand.u32 15, %s28
    %v30 = vld [vmem:[%s0] sm:%s29]
    %v31 = vunpack.c.l.bf16 %v30
    %v32 = vunpack.c.h.bf16 %v30
    %33 = vst [vmem:[#allocation1] sm:%s5] %v31
    %v34 = vld [vmem:[#allocation1] sm:$0xff]
    %vm35 = vcmask 64512
    %36 = vst.msk [vmem:[#allocation0] ss:$8 sm:$0xf] %vm35, %v34
    %37 = vst.msk [vmem:[#allocation0] ss:$8 sm:$0xf0] %vm35, %v34
    %s38 = scalar_lea.vmem [#allocation1], 8
    %v39 = vld [vmem:[%s38] sm:$0xff]
    %vm40 = vcmask 64512
    %s41 = scalar_lea.vmem [#allocation0], 64
    %42 = vst.msk [vmem:[%s41] ss:$8 sm:$0xf] %vm40, %v39
    %s43 = scalar_lea.vmem [#allocation0], 64
    %44 = vst.msk [vmem:[%s43] ss:$8 sm:$0xf0] %vm40, %v39
    %v45 = vld [vmem:[#allocation1] sm:$0xff]
    %46 = vrot.lane.b32.xlu0 %v45, 120
    %v47 = vpop.permute.xlu0 %46
    %vm48 = vcmask 64512
    %s49 = scalar_lea.vmem [#allocation0], 1
    %50 = vst.msk [vmem:[%s49] ss:$8 sm:$0xf] %vm48, %v47
    %s51 = scalar_lea.vmem [#allocation0], 1
    %52 = vst.msk [vmem:[%s51] ss:$8 sm:$0xf0] %vm48, %v47
    %s53 = scalar_lea.vmem [#allocation1], 8
    %v54 = vld [vmem:[%s53] sm:$0xff]
    %55 = vrot.lane.b32.xlu0 %v54, 120
    %v56 = vpop.permute.xlu0 %55
    %vm57 = vcmask 64512
    %s58 = scalar_lea.vmem [#allocation0], 65
    %59 = vst.msk [vmem:[%s58] ss:$8 sm:$0xf] %vm57, %v56
    %s60 = scalar_lea.vmem [#allocation0], 65
    %61 = vst.msk [vmem:[%s60] ss:$8 sm:$0xf0] %vm57, %v56
    %v62 = vld [vmem:[#allocation1] sm:$0xff]
    %63 = vrot.lane.b32.xlu0 %v62, 112
    %v64 = vpop.permute.xlu0 %63
    %vm65 = vcmask 64512
    %s66 = scalar_lea.vmem [#allocation0], 2
    %67 = vst.msk [vmem:[%s66] ss:$8 sm:$0xf] %vm65, %v64
    %s68 = scalar_lea.vmem [#allocation0], 2
    %69 = vst.msk [vmem:[%s68] ss:$8 sm:$0xf0] %vm65, %v64
    %s70 = scalar_lea.vmem [#allocation1], 8
    %v71 = vld [vmem:[%s70] sm:$0xff]
    %72 = vrot.lane.b32.xlu0 %v71, 112
    %v73 = vpop.permute.xlu0 %72
    %vm74 = vcmask 64512
    %s75 = scalar_lea.vmem [#allocation0], 66
    %76 = vst.msk [vmem:[%s75] ss:$8 sm:$0xf] %vm74, %v73
    %s77 = scalar_lea.vmem [#allocation0], 66
    %78 = vst.msk [vmem:[%s77] ss:$8 sm:$0xf0] %vm74, %v73
    %v79 = vld [vmem:[#allocation1] sm:$0xff]
    %80 = vrot.lane.b32.xlu0 %v79, 104
    %v81 = vpop.permute.xlu0 %80
    %vm82 = vcmask 64512
    %s83 = scalar_lea.vmem [#allocation0], 3
    %84 = vst.msk [vmem:[%s83] ss:$8 sm:$0xf] %vm82, %v81
    %s85 = scalar_lea.vmem [#allocation0], 3
    %86 = vst.msk [vmem:[%s85] ss:$8 sm:$0xf0] %vm82, %v81
    %s87 = scalar_lea.vmem [#allocation1], 8
    %v88 = vld [vmem:[%s87] sm:$0xff]
    %89 = vrot.lane.b32.xlu0 %v88, 104
    %v90 = vpop.permute.xlu0 %89
    %vm91 = vcmask 64512
    %s92 = scalar_lea.vmem [#allocation0], 67
    %93 = vst.msk [vmem:[%s92] ss:$8 sm:$0xf] %vm91, %v90
    %s94 = scalar_lea.vmem [#allocation0], 67
    %95 = vst.msk [vmem:[%s94] ss:$8 sm:$0xf0] %vm91, %v90
    %s97 = smul.u32 2, 2
    %s98 = sshll.u32 1, %s97
    %s99 = ssub.s32 %s98, 1
    %s100 = sshrl.u32 %s97, 1
    %v101 = vld [vmem:[#allocation0] sm:%s99]
    %v102 = vpack.c.bf16 0.0, %v101
    %s103 = sshll.u32 1, %s100
    %s104 = ssub.s32 %s103, 1
    %105 = vst [vmem:[%s1] sm:%s104] %v102
    %s106 = scalar_lea.vmem [#allocation0], 8
    %v107 = vld [vmem:[%s106] sm:%s99]
    %v108 = vpack.c.bf16 0.0, %v107
    %s109 = sshll.u32 1, %s100
    %s110 = ssub.s32 %s109, 1
    %s111 = scalar_lea.vmem %s1, 2
    %112 = vst [vmem:[%s111] sm:%s110] %v108
    %s113 = scalar_lea.vmem [#allocation0], 16
    %v114 = vld [vmem:[%s113] sm:%s99]
    %v115 = vpack.c.bf16 0.0, %v114
    %s116 = sshll.u32 1, %s100
    %s117 = ssub.s32 %s116, 1
    %s118 = smul.addr 2, 2
    %s119 = scalar_lea.vmem %s1, %s118
    %120 = vst [vmem:[%s119] sm:%s117] %v115
    %s121 = scalar_lea.vmem [#allocation0], 24
    %v122 = vld [vmem:[%s121] sm:%s99]
    %v123 = vpack.c.bf16 0.0, %v122
    %s124 = sshll.u32 1, %s100
    %s125 = ssub.s32 %s124, 1
    %s126 = smul.addr 2, 3
    %s127 = scalar_lea.vmem %s1, %s126
    %128 = vst [vmem:[%s127] sm:%s125] %v123
    %s129 = scalar_lea.vmem [#allocation0], 32
    %v130 = vld [vmem:[%s129] sm:%s99]
    %v131 = vpack.c.bf16 0.0, %v130
    %s132 = sshll.u32 1, %s100
    %s133 = ssub.s32 %s132, 1
    %s134 = smul.addr 2, 4
    %s135 = scalar_lea.vmem %s1, %s134
    %136 = vst [vmem:[%s135] sm:%s133] %v131
    %s137 = scalar_lea.vmem [#allocation0], 40
    %v138 = vld [vmem:[%s137] sm:%s99]
    %v139 = vpack.c.bf16 0.0, %v138
    %s140 = sshll.u32 1, %s100
    %s141 = ssub.s32 %s140, 1
    %s142 = smul.addr 2, 5
    %s143 = scalar_lea.vmem %s1, %s142
    %144 = vst [vmem:[%s143] sm:%s141] %v139
    %s145 = scalar_lea.vmem [#allocation0], 48
    %v146 = vld [vmem:[%s145] sm:%s99]
    %v147 = vpack.c.bf16 0.0, %v146
    %s148 = sshll.u32 1, %s100
    %s149 = ssub.s32 %s148, 1
    %s150 = smul.addr 2, 6
    %s151 = scalar_lea.vmem %s1, %s150
    %152 = vst [vmem:[%s151] sm:%s149] %v147
    %s153 = scalar_lea.vmem [#allocation0], 56
    %v154 = vld [vmem:[%s153] sm:%s99]
    %v155 = vpack.c.bf16 0.0, %v154
    %s156 = sshll.u32 1, %s100
    %s157 = ssub.s32 %s156, 1
    %s158 = smul.addr 2, 7
    %s159 = scalar_lea.vmem %s1, %s158
    %160 = vst [vmem:[%s159] sm:%s157] %v155
    %s161 = scalar_lea.vmem [#allocation0], 64
    %v162 = vld [vmem:[%s161] sm:%s99]
    %v163 = vpack.c.bf16 0.0, %v162
    %s164 = sshll.u32 1, %s100
    %s165 = ssub.s32 %s164, 1
    %s166 = smul.addr 2, 8
    %s167 = scalar_lea.vmem %s1, %s166
    %168 = vst [vmem:[%s167] sm:%s165] %v163
    %s169 = scalar_lea.vmem [#allocation0], 72
    %v170 = vld [vmem:[%s169] sm:%s99]
    %v171 = vpack.c.bf16 0.0, %v170
    %s172 = sshll.u32 1, %s100
    %s173 = ssub.s32 %s172, 1
    %s174 = smul.addr 2, 9
    %s175 = scalar_lea.vmem %s1, %s174
    %176 = vst [vmem:[%s175] sm:%s173] %v171
    %s177 = scalar_lea.vmem [#allocation0], 80
    %v178 = vld [vmem:[%s177] sm:%s99]
    %v179 = vpack.c.bf16 0.0, %v178
    %s180 = sshll.u32 1, %s100
    %s181 = ssub.s32 %s180, 1
    %s182 = smul.addr 2, 10
    %s183 = scalar_lea.vmem %s1, %s182
    %184 = vst [vmem:[%s183] sm:%s181] %v179
    %s185 = scalar_lea.vmem [#allocation0], 88
    %v186 = vld [vmem:[%s185] sm:%s99]
    %v187 = vpack.c.bf16 0.0, %v186
    %s188 = sshll.u32 1, %s100
    %s189 = ssub.s32 %s188, 1
    %s190 = smul.addr 2, 11
    %s191 = scalar_lea.vmem %s1, %s190
    %192 = vst [vmem:[%s191] sm:%s189] %v187
    %s193 = scalar_lea.vmem [#allocation0], 96
    %v194 = vld [vmem:[%s193] sm:%s99]
    %v195 = vpack.c.bf16 0.0, %v194
    %s196 = sshll.u32 1, %s100
    %s197 = ssub.s32 %s196, 1
    %s198 = smul.addr 2, 12
    %s199 = scalar_lea.vmem %s1, %s198
    %200 = vst [vmem:[%s199] sm:%s197] %v195
    %s201 = scalar_lea.vmem [#allocation0], 104
    %v202 = vld [vmem:[%s201] sm:%s99]
    %v203 = vpack.c.bf16 0.0, %v202
    %s204 = sshll.u32 1, %s100
    %s205 = ssub.s32 %s204, 1
    %s206 = smul.addr 2, 13
    %s207 = scalar_lea.vmem %s1, %s206
    %208 = vst [vmem:[%s207] sm:%s205] %v203
    %s209 = scalar_lea.vmem [#allocation0], 112
    %v210 = vld [vmem:[%s209] sm:%s99]
    %v211 = vpack.c.bf16 0.0, %v210
    %s212 = sshll.u32 1, %s100
    %s213 = ssub.s32 %s212, 1
    %s214 = smul.addr 2, 14
    %s215 = scalar_lea.vmem %s1, %s214
    %216 = vst [vmem:[%s215] sm:%s213] %v211
    %s217 = scalar_lea.vmem [#allocation0], 120
    %v218 = vld [vmem:[%s217] sm:%s99]
    %v219 = vpack.c.bf16 0.0, %v218
    %s220 = sshll.u32 1, %s100
    %s221 = ssub.s32 %s220, 1
    %s222 = smul.addr 2, 15
    %s223 = scalar_lea.vmem %s1, %s222
    %224 = vst [vmem:[%s223] sm:%s221] %v219

// kernel: encoder_layer.4
$region0: #{encoder_layer.4}
  #allocation0 [shape = 'u32[]', space=smem, size = 0x4, offset = 0x4, fixed_abs, tag = 'smem constant byte address 0x4 - core index']
  #allocation1 [shape = 'u32[144,128]{1,0:T(1,128)}', space=vmem, size = 0x12000, scoped, tag = 'internal scratch']
  #allocation2 [shape = 'f32[16,32]{1,0:T(8,128)}', space=vmem, size = 0x2000, scoped, tag = 'scratch operand']
  %s0 = inlined_call_operand.vmem [shape: bf16[3,16,32], index: 0, kind: input, shape index: {}]
  %s1 = inlined_call_operand.vmem [shape: bf16[3,32,32], index: 1, kind: input, shape index: {}]
  %s2 = inlined_call_operand.vmem [shape: f32[3,1,32], index: 2, kind: input, shape index: {}]
  %s3 = inlined_call_operand.vmem [shape: bf16[3,16,32], index: 3, kind: output, shape index: {}]
  %s4 = sld [smem:[#allocation0]]
  $region53: #{encoder_layer.4} parent=0
    _
  %s6 = ssub.s32 1, %s4
  %s7 = scalar_select 0, %s6, %s4
  loop: start=0, step=1, limit=5
  $region2: #{encoder_layer.4} parent=0 // loop_pre_header
    _
  $region3: #{encoder_layer.4} parent=0 // loop_header
    %s9 = sphi 0, %s13
    %p10 = scmp.ge.s32.totalorder %s9, 5
    %s16 = sphi 0, %s42
    %s17 = sphi 0, %s38
    %s18 = sphi 0, %s34
    %s19 = sphi 0, %s30
    %s20 = sphi 0, %s16
    %s21 = sphi 0, %s17
    %s22 = sphi 0, %s18
    %s23 = sphi 0, %s19
    %s24 = sphi 0, %s20
    %s25 = sphi 0, %s21
    %s26 = sphi 0, %s22
    %s27 = sphi 0, %s23
    %s49 = sphi 0, %s51
    %s52 = sphi 0, %s49
    %s53 = sphi 0, %s52
    %s69 = sphi 0, %s53
    %s79 = sphi 0, %s81
    %s82 = sphi 0, %s79
    %s83 = sphi 0, %s82
    %s99 = sphi 0, %s83
    %s107 = sphi 0, %s109
    %s110 = sphi 0, %s107
    %s111 = sphi 0, %s110
    %s127 = sphi 0, %s111
    %s137 = sphi 0, %s139
    %s140 = sphi 0, %s137
    %s141 = sphi 0, %s140
    %s157 = sphi 0, %s141
  $region4: #{encoder_layer.4} parent=0 // loop_header_branch
    %12 = sbr.rel (%p10) target = $region8
  $region5: #{encoder_layer.4} parent=0 // loop_body
    %s14 = ssub.s32 %s9, 1
    %s15 = ssub.s32 %s9, 2
    %s28 = sadd.s32 1, %s19
    %p29 = scmp.ge.s32.totalorder %s28, 1
    %s30 = scalar_select %p29, 0, %s28
    %s31 = sadd.s32 1, %s18
    %s32 = scalar_select %p29, %s31, %s18
    %p33 = scmp.ge.s32.totalorder %s32, 1
    %s34 = scalar_select %p33, 0, %s32
    %s35 = sadd.s32 1, %s17
    %s36 = scalar_select %p33, %s35, %s17
    %p37 = scmp.ge.s32.totalorder %s36, 1
    %s38 = scalar_select %p37, 0, %s36
    %s39 = sadd.s32 1, %s16
    %s40 = scalar_select %p37, %s39, %s16
    %p41 = scmp.ge.s32.totalorder %s40, 3
    %s42 = scalar_select %p41, 0, %s40
    %s43 = ssub.s32 %s16, %s42
    %s44 = ssub.s32 %s17, %s38
    %s45 = sor.u32 %s43, %s44
    %s46 = ssub.s32 %s19, %s30
    %s47 = sor.u32 %s45, %s46
    %p48 = scmp.eq.s32.totalorder %s47, 0
    %s50 = sadd.s32 %s49, 1
    %s51 = scalar_select %p48, %s49, %s50
    %p54 = pneg %p48
    %p55 = scmp.eq.s32.totalorder %s9, 2
    %p56 = por %p54, %p55
    %p57 = scmp.ne.s32.totalorder %s49, %s52
    %p58 = scmp.eq.s32.totalorder %s9, 0
    %p59 = por %p57, %p58
    %p60 = scmp.ne.s32.totalorder %s49, %s52
    %p61 = scmp.eq.s32.totalorder %s14, 2
    %p62 = por %p60, %p61
    %p63 = scmp.ne.s32.totalorder %s52, %s53
    %p64 = scmp.eq.s32.totalorder %s14, 0
    %p65 = por %p63, %p64
    %p66 = scmp.ne.s32.totalorder %s52, %s53
    %p67 = scmp.eq.s32.totalorder %s15, 2
    %p68 = por %p66, %p67
    %p70 = scmp.ne.s32.totalorder %s53, %s69
    %p71 = scmp.eq.s32.totalorder %s15, 0
    %p72 = por %p70, %p71
    %s73 = ssub.s32 %s16, %s42
    %s74 = ssub.s32 %s19, %s30
    %s75 = sor.u32 %s73, %s74
    %s76 = ssub.s32 %s18, %s34
    %s77 = sor.u32 %s75, %s76
    %p78 = scmp.eq.s32.totalorder %s77, 0
    %s80 = sadd.s32 %s79, 1
    %s81 = scalar_select %p78, %s79, %s80
    %p84 = pneg %p78
    %p85 = scmp.eq.s32.totalorder %s9, 2
    %p86 = por %p84, %p85
    %p87 = scmp.ne.s32.totalorder %s79, %s82
    %p88 = scmp.eq.s32.totalorder %s9, 0
    %p89 = por %p87, %p88
    %p90 = scmp.ne.s32.totalorder %s79, %s82
    %p91 = scmp.eq.s32.totalorder %s14, 2
    %p92 = por %p90, %p91
    %p93 = scmp.ne.s32.totalorder %s82, %s83
    %p94 = scmp.eq.s32.totalorder %s14, 0
    %p95 = por %p93, %p94
    %p96 = scmp.ne.s32.totalorder %s82, %s83
    %p97 = scmp.eq.s32.totalorder %s15, 2
    %p98 = por %p96, %p97
    %p100 = scmp.ne.s32.totalorder %s83, %s99
    %p101 = scmp.eq.s32.totalorder %s15, 0
    %p102 = por %p100, %p101
    %s103 = ssub.s32 %s16, %s42
    %s104 = ssub.s32 %s18, %s34
    %s105 = sor.u32 %s103, %s104
    %p106 = scmp.eq.s32.totalorder %s105, 0
    %s108 = sadd.s32 %s107, 1
    %s109 = scalar_select %p106, %s107, %s108
    %p112 = pneg %p106
    %p113 = scmp.eq.s32.totalorder %s9, 2
    %p114 = por %p112, %p113
    %p115 = scmp.ne.s32.totalorder %s107, %s110
    %p116 = scmp.eq.s32.totalorder %s9, 0
    %p117 = por %p115, %p116
    %p118 = scmp.ne.s32.totalorder %s107, %s110
    %p119 = scmp.eq.s32.totalorder %s14, 2
    %p120 = por %p118, %p119
    %p121 = scmp.ne.s32.totalorder %s110, %s111
    %p122 = scmp.eq.s32.totalorder %s14, 0
    %p123 = por %p121, %p122
    %p124 = scmp.ne.s32.totalorder %s110, %s111
    %p125 = scmp.eq.s32.totalorder %s15, 2
    %p126 = por %p124, %p125
    %p128 = scmp.ne.s32.totalorder %s111, %s127
    %p129 = scmp.eq.s32.totalorder %s15, 0
    %p130 = por %p128, %p129
    %s131 = ssub.s32 %s16, %s42
    %s132 = ssub.s32 %s17, %s38
    %s133 = sor.u32 %s131, %s132
    %s134 = ssub.s32 %s18, %s34
    %s135 = sor.u32 %s133, %s134
    %p136 = scmp.eq.s32.totalorder %s135, 0
    %s138 = sadd.s32 %s137, 1
    %s139 = scalar_select %p136, %s137, %s138
    %p142 = pneg %p136
    %p143 = scmp.eq.s32.totalorder %s9, 2
    %p144 = por %p142, %p143
    %p145 = scmp.ne.s32.totalorder %s137, %s140
    %p146 = scmp.eq.s32.totalorder %s9, 0
    %p147 = por %p145, %p146
    %p148 = scmp.ne.s32.totalorder %s137, %s140
    %p149 = scmp.eq.s32.totalorder %s14, 2
    %p150 = por %p148, %p149
    %p151 = scmp.ne.s32.totalorder %s140, %s141
    %p152 = scmp.eq.s32.totalorder %s14, 0
    %p153 = por %p151, %p152
    %p154 = scmp.ne.s32.totalorder %s140, %s141
    %p155 = scmp.eq.s32.totalorder %s15, 2
    %p156 = por %p154, %p155
    %p158 = scmp.ne.s32.totalorder %s141, %s157
    %p159 = scmp.eq.s32.totalorder %s15, 0
    %p160 = por %p158, %p159
    %p161 = scmp.le.s32.totalorder 1, %s9
    %p162 = scmp.lt.s32.totalorder %s9, 4
    %p163 = pnand %p161, %p162
    %p164 = pneg %p163
    // Predicated region
    $region9: #{encoder_layer.4} parent=5 // pred_check
      _
    $region10: #{encoder_layer.4} parent=5 // pred_check_branch
      %166 = sbr.rel (%p163) target = $region12
    $region11: #{encoder_layer.4} parent=5 // pred_region
      %s167 = ssub.s32 %s9, 1
    $region12: #{encoder_layer.4} parent=5 // pred_fallthru
      _
    %p168 = scmp.lt.s32.totalorder %s9, 3
    // Predicated region
    $region13: #{encoder_layer.4} parent=5 // pred_check
      %p169 = pneg %p168
    $region14: #{encoder_layer.4} parent=5 // pred_check_branch
      %171 = sbr.rel (%p169) target = $region16
    $region15: #{encoder_layer.4} parent=5 // pred_region
      // Predicated region
      $region17: #{encoder_layer.4} parent=15 // pred_check
        %p172 = pneg %p59
      $region18: #{encoder_layer.4} parent=15 // pred_check_branch
        %174 = sbr.rel (%p172) target = $region20
      $region19: #{encoder_layer.4} parent=15 // pred_region
        %s175 = smul.u32 2, %s17
        %p176 = scmp.lt.s32.totalorder %s16, 2
        %s177 = scalar_select %p176, %s16, 2
        %p178 = scmp.lt.s32.totalorder %s175, 1
        %s179 = scalar_select %p178, %s175, 1
        %p180 = scmp.lt.s32.totalorder %s19, 0
        %s181 = scalar_select %p180, %s19, 0
        %s182 = sadd.s32 %s181, %s179
        %s183 = smul.addr %s177, 2
        %s184 = sadd.s32 %s182, %s183
        %s185 = smul.addr %s184, 4
        %s186 = scalar_lea.vmem %s0, %s185
        %s187 = smul.u32 2, %s17
      $region20: #{encoder_layer.4} parent=15 // pred_fallthru
        _
      // Predicated region
      $region21: #{encoder_layer.4} parent=15 // pred_check
        %p188 = pneg %p89
      $region22: #{encoder_layer.4} parent=15 // pred_check_branch
        %190 = sbr.rel (%p188) target = $region24
      $region23: #{encoder_layer.4} parent=15 // pred_region
        %s191 = smul.u32 4, %s19
        %p192 = scmp.lt.s32.totalorder %s16, 2
        %s193 = scalar_select %p192, %s16, 2
        %p194 = scmp.lt.s32.totalorder %s191, 3
        %s195 = scalar_select %p194, %s191, 3
        %p196 = scmp.lt.s32.totalorder %s18, 0
        %s197 = scalar_select %p196, %s18, 0
        %s198 = sadd.s32 %s197, %s195
        %s199 = smul.addr %s193, 4
        %s200 = sadd.s32 %s198, %s199
        %s201 = smul.addr %s200, 4
        %s202 = scalar_lea.vmem %s1, %s201
        %s203 = smul.u32 4, %s19
      $region24: #{encoder_layer.4} parent=15 // pred_fallthru
        _
      // Predicated region
      $region25: #{encoder_layer.4} parent=15 // pred_check
        %p204 = pneg %p117
      $region26: #{encoder_layer.4} parent=15 // pred_check_branch
        %206 = sbr.rel (%p204) target = $region28
      $region27: #{encoder_layer.4} parent=15 // pred_region
        %p207 = scmp.lt.s32.totalorder %s16, 2
        %s208 = scalar_select %p207, %s16, 2
        %p209 = scmp.lt.s32.totalorder %s18, 0
        %s210 = scalar_select %p209, %s18, 0
        %s211 = sadd.s32 %s210, %s208
        %s212 = scalar_lea.vmem %s2, %s211
      $region28: #{encoder_layer.4} parent=15 // pred_fallthru
        _
    $region16: #{encoder_layer.4} parent=5 // pred_fallthru
      _
    %p213 = scmp.le.s32.totalorder 1, %s9
    %p214 = scmp.lt.s32.totalorder %s9, 4
    %p215 = pnand %p213, %p214
    %p216 = pneg %p215
    // Predicated region
    $region29: #{encoder_layer.4} parent=5 // pred_check
      _
    $region30: #{encoder_layer.4} parent=5 // pred_check_branch
      %218 = sbr.rel (%p215) target = $region32
    $region31: #{encoder_layer.4} parent=5 // pred_region
      %s219 = ssub.s32 %s9, 1
      %s220 = smul.u32 2, %s21
      %p221 = scmp.lt.s32.totalorder %s20, 2
      %s222 = scalar_select %p221, %s20, 2
      %p223 = scmp.lt.s32.totalorder %s220, 1
      %s224 = scalar_select %p223, %s220, 1
      %p225 = scmp.lt.s32.totalorder %s23, 0
      %s226 = scalar_select %p225, %s23, 0
      %s227 = sadd.s32 %s226, %s224
      %s228 = smul.addr %s222, 2
      %s229 = sadd.s32 %s227, %s228
      %s230 = smul.addr %s229, 4
      %s231 = scalar_lea.vmem %s0, %s230
      %p232 = pneg %p65
      %p233 = pneg %p62
      %s234 = smul.u32 4, %s23
      %p235 = scmp.lt.s32.totalorder %s20, 2
      %s236 = scalar_select %p235, %s20, 2
      %p237 = scmp.lt.s32.totalorder %s234, 3
      %s238 = scalar_select %p237, %s234, 3
      %p239 = scmp.lt.s32.totalorder %s22, 0
      %s240 = scalar_select %p239, %s22, 0
      %s241 = sadd.s32 %s240, %s238
      %s242 = smul.addr %s236, 4
      %s243 = sadd.s32 %s241, %s242
      %s244 = smul.addr %s243, 4
      %s245 = scalar_lea.vmem %s1, %s244
      %p246 = pneg %p95
      %p247 = pneg %p92
      %p248 = scmp.lt.s32.totalorder %s20, 2
      %s249 = scalar_select %p248, %s20, 2
      %p250 = scmp.lt.s32.totalorder %s22, 0
      %s251 = scalar_select %p250, %s22, 0
      %s252 = sadd.s32 %s251, %s249
      %s253 = scalar_lea.vmem %s2, %s252
      %p254 = pneg %p123
      %p255 = pneg %p120
      %p256 = pneg %p153
      %p257 = pneg %p150
      %s258 = smul.u32 2, %s21
      %p259 = scmp.lt.s32.totalorder %s20, 2
      %s260 = scalar_select %p259, %s20, 2
      %p261 = scmp.lt.s32.totalorder %s258, 1
      %s262 = scalar_select %p261, %s258, 1
      %p263 = scmp.lt.s32.totalorder %s22, 0
      %s264 = scalar_select %p263, %s22, 0
      %s265 = sadd.s32 %s264, %s262
      %s266 = smul.addr %s260, 2
      %s267 = sadd.s32 %s265, %s266
      %s268 = smul.addr %s267, 4
      %s269 = scalar_lea.vmem %s3, %s268
      %s270 = smul.u32 2, %s21
      %p271 = scmp.lt.s32.totalorder %s20, 2
      %s272 = scalar_select %p271, %s20, 2
      %p273 = scmp.lt.s32.totalorder %s270, 1
      %s274 = scalar_select %p273, %s270, 1
      %p275 = scmp.lt.s32.totalorder %s23, 0
      %s276 = scalar_select %p275, %s23, 0
      %s277 = sadd.s32 %s276, %s274
      %s278 = smul.addr %s272, 2
      %s279 = sadd.s32 %s277, %s278
      %s280 = smul.addr %s279, 4
      %s281 = scalar_lea.vmem %s0, %s280
      %s282 = smul.u32 2, %s21
      %s283 = smul.u32 4, %s23
      %p284 = scmp.lt.s32.totalorder %s20, 2
      %s285 = scalar_select %p284, %s20, 2
      %p286 = scmp.lt.s32.totalorder %s283, 3
      %s287 = scalar_select %p286, %s283, 3
      %p288 = scmp.lt.s32.totalorder %s22, 0
      %s289 = scalar_select %p288, %s22, 0
      %s290 = sadd.s32 %s289, %s287
      %s291 = smul.addr %s285, 4
      %s292 = sadd.s32 %s290, %s291
      %s293 = smul.addr %s292, 4
      %s294 = scalar_lea.vmem %s1, %s293
      %s295 = smul.u32 4, %s23
      %p296 = scmp.lt.s32.totalorder %s20, 2
      %s297 = scalar_select %p296, %s20, 2
      %p298 = scmp.lt.s32.totalorder %s22, 0
      %s299 = scalar_select %p298, %s22, 0
      %s300 = sadd.s32 %s299, %s297
      %s301 = scalar_lea.vmem %s2, %s300
      %s302 = smul.u32 2, %s21
      %p303 = scmp.lt.s32.totalorder %s20, 2
      %s304 = scalar_select %p303, %s20, 2
      %p305 = scmp.lt.s32.totalorder %s302, 1
      %s306 = scalar_select %p305, %s302, 1
      %p307 = scmp.lt.s32.totalorder %s22, 0
      %s308 = scalar_select %p307, %s22, 0
      %s309 = sadd.s32 %s308, %s306
      %s310 = smul.addr %s304, 2
      %s311 = sadd.s32 %s309, %s310
      %s312 = smul.addr %s311, 4
      %s313 = scalar_lea.vmem %s3, %s312
      %s314 = smul.u32 2, %s21
      %p316 = scmp.eq.s32.totalorder %s23, 0
      // Predicated region
      $region33: #{encoder_layer.4} parent=31 // pred_check
        %p317 = pneg %p316
      $region34: #{encoder_layer.4} parent=31 // pred_check_branch
        %319 = sbr.rel (%p317) target = $region36
      $region35: #{encoder_layer.4} parent=31 // pred_region
        %vm320 = vcmask 261120
        %321 = vst.msk [vmem:[#allocation2] sm:$0xff] %vm320, 0.0
        %322 = vst.msk [vmem:[#allocation2 + $0x8] sm:$0xff] %vm320, 0.0
      $region36: #{encoder_layer.4} parent=31 // pred_fallthru
        _
      %v323 = vld [vmem:[#allocation2] sm:$0xff]
      %v324 = vld [vmem:[#allocation2 + $0x8] sm:$0xff]
      %v325 = vld [vmem:[%s281] sm:$0xf]
      %v326 = vld [vmem:[%s281 + $0x4] sm:$0xf]
      %v327 = vld [vmem:[%s294] sm:$0xf]
      %v328 = vld [vmem:[%s294 + $0x4] sm:$0xf]
      %v329 = vld [vmem:[%s294 + $0x8] sm:$0xf]
      %v330 = vld [vmem:[%s294 + $0xc] sm:$0xf]
      %v333 = vunpack.c.l.b16 %v325
      %v334 = vunpack.c.l.b16 %v326
      %v335 = vpack.c.b16 %v334, %v333
      %v340 = vunpack.c.l.b16 %v327
      %v341 = vunpack.c.l.b16 %v328
      %v342 = vunpack.c.l.b16 %v329
      %v343 = vunpack.c.l.b16 %v330
      %v344 = vpack.c.b16 %v341, %v340
      %v345 = vpack.c.b16 %v343, %v342
      %vm348 = vcmask 261120
      %v350 = vsel %vm348, %v335, 0
      %352 = vmatprep.subr.bf16.mxu0 0
      %353 = vmatpush1.bf16.msra.mxu0 0
      %354 = vmatprep.subr.bf16.mxu0 0
      %355 = vmatpush1.bf16.msra.mxu0 0
      %356 = vmatprep.subr.bf16.mxu0 0
      %357 = vmatpush1.bf16.msra.mxu0 0
      %358 = vmatprep.subr.bf16.mxu0 0
      %359 = vmatpush1.bf16.msra.mxu0 0
      %360 = vmatprep.subr.bf16.mxu0 0
      %361 = vmatpush1.bf16.msra.mxu0 0
      %362 = vmatprep.subr.bf16.mxu0 0
      %363 = vmatpush1.bf16.msra.mxu0 0
      %364 = vmatprep.subr.bf16.mxu0 0
      %365 = vmatpush1.bf16.msra.mxu0 %v345
      %366 = vmatprep.subr.bf16.mxu0 0
      %367 = vmatpush1.bf16.msra.mxu0 %v344
      %368 = vmatprep.subr.bf16.mxu0 0
      %369 = vmatpush2.bf16.msra.mxu0 0
      %370 = vmatprep.subr.bf16.mxu0 0
      %371 = vmatpush2.bf16.msra.mxu0 0
      %372 = vmatprep.subr.bf16.mxu0 0
      %373 = vmatpush2.bf16.msra.mxu0 0
      %374 = vmatprep.subr.bf16.mxu0 0
      %375 = vmatpush2.bf16.msra.mxu0 0
      %376 = vmatprep.subr.bf16.mxu0 0
      %377 = vmatpush2.bf16.msra.mxu0 0
      %378 = vmatprep.subr.bf16.mxu0 0
      %379 = vmatpush2.bf16.msra.mxu0 0
      %380 = vmatprep.subr.bf16.mxu0 0
      %381 = vmatpush2.bf16.msra.mxu0 0
      %382 = vmatprep.subr.bf16.mxu0 0
      %383 = vmatpush2.bf16.msra.mxu0 0
      %384 = vmatprep.mubr.bf16.mxu0 0
      %385 = vmatmul.mubr.bf16.gmra.mxu0 %v350
      %v386 = vpop.f32.mrf.mxu0
      %v387 = vadd.f32 0.0, %v386
      %v388 = vpop.f32.mrf.mxu0
      %v389 = vpop.f32.mrf.mxu0
      %v390 = vadd.f32 0.0, %v389
      %v391 = vpop.f32.mrf.mxu0
      %392 = vdwg.mxu0
      %v393 = vadd.f32 %v323, %v387
      %v394 = vadd.f32 %v324, %v390
      %395 = vst.msk [vmem:[#allocation2] sm:$0xff] %vm348, %v393
      %396 = vst.msk [vmem:[#allocation2 + $0x8] sm:$0xff] %vm348, %v394
      // Predicated region
      $region37: #{encoder_layer.4} parent=31 // pred_check
        %p397 = pneg %p316
      $region38: #{encoder_layer.4} parent=31 // pred_check_branch
        %399 = sbr.rel (%p397) target = $region40
      $region39: #{encoder_layer.4} parent=31 // pred_region
        %v400 = vld [vmem:[#allocation2] sm:$0xff]
        %v401 = vld [vmem:[#allocation2 + $0x8] sm:$0xff]
        %v402 = vld [vmem:[%s301] sm:$0x1]
        %v404 = vlaneseq
        %v405 = vshrl.u32 %v404, 7
        %v406 = vsub.s32 0, %v405
        %v407 = vrot.slane %v402, %v406
        %v409 = vadd.f32 %v400, %v407
        %v410 = vadd.f32 %v401, %v407
        %v411 = vpack.c.bf16 %v410, %v409
        %v413 = vunpack.c.l.b16 %v411
        %v414 = vunpack.c.h.b16 %v411
        %v415 = vpack.c.b16 %v413, %v413
        %v416 = vpack.c.b16 %v414, %v414
        %vm419 = vcmask 257024
        %420 = vst.msk [vmem:[%s313] sm:$0xf] %vm419, %v415
        %421 = vst.msk [vmem:[%s313 + $0x4] sm:$0xf] %vm419, %v416
      $region40: #{encoder_layer.4} parent=31 // pred_fallthru
        _
      %s422 = smul.u32 2, %s21
      %p423 = scmp.lt.s32.totalorder %s20, 2
      %s424 = scalar_select %p423, %s20, 2
      %p425 = scmp.lt.s32.totalorder %s422, 1
      %s426 = scalar_select %p425, %s422, 1
      %p427 = scmp.lt.s32.totalorder %s22, 0
      %s428 = scalar_select %p427, %s22, 0
      %s429 = sadd.s32 %s428, %s426
      %s430 = smul.addr %s424, 2
      %s431 = sadd.s32 %s429, %s430
      %s432 = smul.addr %s431, 4
      %s433 = scalar_lea.vmem %s3, %s432
      // Predicated region
      $region41: #{encoder_layer.4} parent=31 // pred_check
        %p434 = pneg %p150
      $region42: #{encoder_layer.4} parent=31 // pred_check_branch
        %436 = sbr.rel (%p434) target = $region44
      $region43: #{encoder_layer.4} parent=31 // pred_region
        %s437 = smul.u32 2, %s21
      $region44: #{encoder_layer.4} parent=31 // pred_fallthru
        _
    $region32: #{encoder_layer.4} parent=5 // pred_fallthru
      _
    %p438 = scmp.le.s32.totalorder 2, %s9
    // Predicated region
    $region45: #{encoder_layer.4} parent=5 // pred_check
      %p439 = pneg %p438
    $region46: #{encoder_layer.4} parent=5 // pred_check_branch
      %441 = sbr.rel (%p439) target = $region48
    $region47: #{encoder_layer.4} parent=5 // pred_region
      %s442 = ssub.s32 %s9, 2
      // Predicated region
      $region49: #{encoder_layer.4} parent=47 // pred_check
        %p443 = pneg %p156
      $region50: #{encoder_layer.4} parent=47 // pred_check_branch
        %445 = sbr.rel (%p443) target = $region52
      $region51: #{encoder_layer.4} parent=47 // pred_region
        %s446 = smul.u32 2, %s25
        %p447 = scmp.lt.s32.totalorder %s24, 2
        %s448 = scalar_select %p447, %s24, 2
        %p449 = scmp.lt.s32.totalorder %s446, 1
        %s450 = scalar_select %p449, %s446, 1
        %p451 = scmp.lt.s32.totalorder %s26, 0
        %s452 = scalar_select %p451, %s26, 0
        %s453 = sadd.s32 %s452, %s450
        %s454 = smul.addr %s448, 2
        %s455 = sadd.s32 %s453, %s454
        %s456 = smul.addr %s455, 4
        %s457 = scalar_lea.vmem %s3, %s456
      $region52: #{encoder_layer.4} parent=47 // pred_fallthru
        _
    $region48: #{encoder_layer.4} parent=5 // pred_fallthru
      _
  $region6: #{encoder_layer.4} parent=0 // loop_footer
    %s13 = sadd.s32 1, %s9
  $region7: #{encoder_layer.4} parent=0 // loop_footer_branch
    %8 = sbr.rel target = $region3
  $region8: #{encoder_layer.4} parent=0 // loop_exit
    _

// kernel: encoder_layer.5
$region0: #{encoder_layer.5}
  #allocation0 [shape = 'u32[]', space=smem, size = 0x4, offset = 0x4, fixed_abs, tag = 'smem constant byte address 0x4 - core index']
  #allocation1 [shape = 'u32[144,128]{1,0:T(1,128)}', space=vmem, size = 0x12000, scoped, tag = 'internal scratch']
  %s0 = inlined_call_operand.vmem [shape: bf16[8,8,8], index: 0, kind: input, shape index: {}]
  %s1 = inlined_call_operand.vmem [shape: bf16[8,8,8], index: 1, kind: input, shape index: {}]
  %s2 = inlined_call_operand.vmem [shape: bf16[8,8,8], index: 2, kind: input, shape index: {}]
  %s3 = inlined_call_operand.vmem [shape: bf16[8,8,8], index: 3, kind: output, shape index: {0}]
  %s4 = inlined_call_operand.hbm [shape: f32[8,8,8], index: 4, kind: output, shape index: {1}]
  %5 = xla_tuple %s3, %s4
  %s6 = sld [smem:[#allocation0]]
  $region53: #{encoder_layer.5} parent=0
    _
  %s8 = ssub.s32 1, %s6
  %s9 = scalar_select 0, %s8, %s6
  $region1: #{encoder_layer.5} parent=0
    #allocation2 [shape = 'u8[8192]{0}', space=vmem, size = 0x2000, scoped, tag = 'output window, operand 1']
    #allocation3 [shape = 's32[2]{0}', space=sflag, size = 0x8, scoped, tag = 'scoped memory for encoder_layer.5']
    %10 = vsyncpa [#allocation3], 0
    %s11 = scalar_lea.sflag [#allocation3], 1
    %12 = vsyncpa %s11, 0
    loop: start=0, step=1, limit=10
    $region2: #{encoder_layer.5} parent=1 // loop_pre_header
      _
    $region3: #{encoder_layer.5} parent=1 // loop_header
      %s14 = sphi 0, %s18
      %p15 = scmp.ge.s32.totalorder %s14, 10
      %s21 = sphi 0, %s33
      %s22 = sphi 0, %s29
      %s23 = sphi 0, %s21
      %s24 = sphi 0, %s22
      %s25 = sphi 0, %s23
      %s26 = sphi 0, %s24
      %s38 = sphi 0, %s40
      %s41 = sphi 0, %s38
      %s42 = sphi 0, %s41
      %s58 = sphi 0, %s42
      %s64 = sphi 0, %s66
      %s67 = sphi 0, %s64
      %s68 = sphi 0, %s67
      %s84 = sphi 0, %s68
      %s90 = sphi 0, %s92
      %s93 = sphi 0, %s90
      %s94 = sphi 0, %s93
      %s110 = sphi 0, %s94
      %s118 = sphi 0, %s120
      %s121 = sphi 0, %s118
      %s122 = sphi 0, %s121
      %s138 = sphi 0, %s122
      %s146 = sphi 0, %s148
      %s149 = sphi 0, %s146
      %s150 = sphi 0, %s149
      %s166 = sphi 0, %s150
    $region4: #{encoder_layer.5} parent=1 // loop_header_branch
      %17 = sbr.rel (%p15) target = $region8
    $region5: #{encoder_layer.5} parent=1 // loop_body
      %s19 = ssub.s32 %s14, 1
      %s20 = ssub.s32 %s14, 2
      %s27 = sadd.s32 1, %s22
      %p28 = scmp.ge.s32.totalorder %s27, 1
      %s29 = scalar_select %p28, 0, %s27
      %s30 = sadd.s32 1, %s21
      %s31 = scalar_select %p28, %s30, %s21
      %p32 = scmp.ge.s32.totalorder %s31, 8
      %s33 = scalar_select %p32, 0, %s31
      %s34 = ssub.s32 %s21, %s33
      %s35 = ssub.s32 %s22, %s29
      %s36 = sor.u32 %s34, %s35
      %p37 = scmp.eq.s32.totalorder %s36, 0
      %s39 = sadd.s32 %s38, 1
      %s40 = scalar_select %p37, %s38, %s39
      %p43 = pneg %p37
      %p44 = scmp.eq.s32.totalorder %s14, 7
      %p45 = por %p43, %p44
      %p46 = scmp.ne.s32.totalorder %s38, %s41
      %p47 = scmp.eq.s32.totalorder %s14, 0
      %p48 = por %p46, %p47
      %p49 = scmp.ne.s32.totalorder %s38, %s41
      %p50 = scmp.eq.s32.totalorder %s19, 7
      %p51 = por %p49, %p50
      %p52 = scmp.ne.s32.totalorder %s41, %s42
      %p53 = scmp.eq.s32.totalorder %s19, 0
      %p54 = por %p52, %p53
      %p55 = scmp.ne.s32.totalorder %s41, %s42
      %p56 = scmp.eq.s32.totalorder %s20, 7
      %p57 = por %p55, %p56
      %p59 = scmp.ne.s32.totalorder %s42, %s58
      %p60 = scmp.eq.s32.totalorder %s20, 0
      %p61 = por %p59, %p60
      %s62 = ssub.s32 %s21, %s33
      %p63 = scmp.eq.s32.totalorder %s62, 0
      %s65 = sadd.s32 %s64, 1
      %s66 = scalar_select %p63, %s64, %s65
      %p69 = pneg %p63
      %p70 = scmp.eq.s32.totalorder %s14, 7
      %p71 = por %p69, %p70
      %p72 = scmp.ne.s32.totalorder %s64, %s67
      %p73 = scmp.eq.s32.totalorder %s14, 0
      %p74 = por %p72, %p73
      %p75 = scmp.ne.s32.totalorder %s64, %s67
      %p76 = scmp.eq.s32.totalorder %s19, 7
      %p77 = por %p75, %p76
      %p78 = scmp.ne.s32.totalorder %s67, %s68
      %p79 = scmp.eq.s32.totalorder %s19, 0
      %p80 = por %p78, %p79
      %p81 = scmp.ne.s32.totalorder %s67, %s68
      %p82 = scmp.eq.s32.totalorder %s20, 7
      %p83 = por %p81, %p82
      %p85 = scmp.ne.s32.totalorder %s68, %s84
      %p86 = scmp.eq.s32.totalorder %s20, 0
      %p87 = por %p85, %p86
      %s88 = ssub.s32 %s21, %s33
      %p89 = scmp.eq.s32.totalorder %s88, 0
      %s91 = sadd.s32 %s90, 1
      %s92 = scalar_select %p89, %s90, %s91
      %p95 = pneg %p89
      %p96 = scmp.eq.s32.totalorder %s14, 7
      %p97 = por %p95, %p96
      %p98 = scmp.ne.s32.totalorder %s90, %s93
      %p99 = scmp.eq.s32.totalorder %s14, 0
      %p100 = por %p98, %p99
      %p101 = scmp.ne.s32.totalorder %s90, %s93
      %p102 = scmp.eq.s32.totalorder %s19, 7
      %p103 = por %p101, %p102
      %p104 = scmp.ne.s32.totalorder %s93, %s94
      %p105 = scmp.eq.s32.totalorder %s19, 0
      %p106 = por %p104, %p105
      %p107 = scmp.ne.s32.totalorder %s93, %s94
      %p108 = scmp.eq.s32.totalorder %s20, 7
      %p109 = por %p107, %p108
      %p111 = scmp.ne.s32.totalorder %s94, %s110
      %p112 = scmp.eq.s32.totalorder %s20, 0
      %p113 = por %p111, %p112
      %s114 = ssub.s32 %s21, %s33
      %s115 = ssub.s32 %s22, %s29
      %s116 = sor.u32 %s114, %s115
      %p117 = scmp.eq.s32.totalorder %s116, 0
      %s119 = sadd.s32 %s118, 1
      %s120 = scalar_select %p117, %s118, %s119
      %p123 = pneg %p117
      %p124 = scmp.eq.s32.totalorder %s14, 7
      %p125 = por %p123, %p124
      %p126 = scmp.ne.s32.totalorder %s118, %s121
      %p127 = scmp.eq.s32.totalorder %s14, 0
      %p128 = por %p126, %p127
      %p129 = scmp.ne.s32.totalorder %s118, %s121
      %p130 = scmp.eq.s32.totalorder %s19, 7
      %p131 = por %p129, %p130
      %p132 = scmp.ne.s32.totalorder %s121, %s122
      %p133 = scmp.eq.s32.totalorder %s19, 0
      %p134 = por %p132, %p133
      %p135 = scmp.ne.s32.totalorder %s121, %s122
      %p136 = scmp.eq.s32.totalorder %s20, 7
      %p137 = por %p135, %p136
      %p139 = scmp.ne.s32.totalorder %s122, %s138
      %p140 = scmp.eq.s32.totalorder %s20, 0
      %p141 = por %p139, %p140
      %s142 = ssub.s32 %s21, %s33
      %s143 = ssub.s32 %s22, %s29
      %s144 = sor.u32 %s142, %s143
      %p145 = scmp.eq.s32.totalorder %s144, 0
      %s147 = sadd.s32 %s146, 1
      %s148 = scalar_select %p145, %s146, %s147
      %p151 = pneg %p145
      %p152 = scmp.eq.s32.totalorder %s14, 7
      %p153 = por %p151, %p152
      %p154 = scmp.ne.s32.totalorder %s146, %s149
      %p155 = scmp.eq.s32.totalorder %s14, 0
      %p156 = por %p154, %p155
      %p157 = scmp.ne.s32.totalorder %s146, %s149
      %p158 = scmp.eq.s32.totalorder %s19, 7
      %p159 = por %p157, %p158
      %p160 = scmp.ne.s32.totalorder %s149, %s150
      %p161 = scmp.eq.s32.totalorder %s19, 0
      %p162 = por %p160, %p161
      %p163 = scmp.ne.s32.totalorder %s149, %s150
      %p164 = scmp.eq.s32.totalorder %s20, 7
      %p165 = por %p163, %p164
      %p167 = scmp.ne.s32.totalorder %s150, %s166
      %p168 = scmp.eq.s32.totalorder %s20, 0
      %p169 = por %p167, %p168
      %p170 = scmp.le.s32.totalorder 1, %s14
      %p171 = scmp.lt.s32.totalorder %s14, 9
      %p172 = pnand %p170, %p171
      %p173 = pneg %p172
      // Predicated region
      $region9: #{encoder_layer.5} parent=5 // pred_check
        _
      $region10: #{encoder_layer.5} parent=5 // pred_check_branch
        %175 = sbr.rel (%p172) target = $region12
      $region11: #{encoder_layer.5} parent=5 // pred_region
        %s176 = ssub.s32 %s14, 1
      $region12: #{encoder_layer.5} parent=5 // pred_fallthru
        _
      %p177 = scmp.lt.s32.totalorder %s14, 8
      // Predicated region
      $region13: #{encoder_layer.5} parent=5 // pred_check
        %p178 = pneg %p177
      $region14: #{encoder_layer.5} parent=5 // pred_check_branch
        %180 = sbr.rel (%p178) target = $region16
      $region15: #{encoder_layer.5} parent=5 // pred_region
        // Predicated region
        $region17: #{encoder_layer.5} parent=15 // pred_check
          %p181 = pneg %p48
        $region18: #{encoder_layer.5} parent=15 // pred_check_branch
          %183 = sbr.rel (%p181) target = $region20
        $region19: #{encoder_layer.5} parent=15 // pred_region
          %p184 = scmp.lt.s32.totalorder %s21, 7
          %s185 = scalar_select %p184, %s21, 7
          %p186 = scmp.lt.s32.totalorder %s22, 0
          %s187 = scalar_select %p186, %s22, 0
          %s188 = sadd.s32 %s187, %s185
          %s189 = smul.addr %s188, 4
          %s190 = scalar_lea.vmem %s0, %s189
        $region20: #{encoder_layer.5} parent=15 // pred_fallthru
          _
        // Predicated region
        $region21: #{encoder_layer.5} parent=15 // pred_check
          %p191 = pneg %p74
        $region22: #{encoder_layer.5} parent=15 // pred_check_branch
          %193 = sbr.rel (%p191) target = $region24
        $region23: #{encoder_layer.5} parent=15 // pred_region
          %p194 = scmp.lt.s32.totalorder %s21, 7
          %s195 = scalar_select %p194, %s21, 7
          %s196 = smul.addr %s195, 4
          %s197 = scalar_lea.vmem %s1, %s196
        $region24: #{encoder_layer.5} parent=15 // pred_fallthru
          _
        // Predicated region
        $region25: #{encoder_layer.5} parent=15 // pred_check
          %p198 = pneg %p100
        $region26: #{encoder_layer.5} parent=15 // pred_check_branch
          %200 = sbr.rel (%p198) target = $region28
        $region27: #{encoder_layer.5} parent=15 // pred_region
          %p201 = scmp.lt.s32.totalorder %s21, 7
          %s202 = scalar_select %p201, %s21, 7
          %s203 = smul.addr %s202, 4
          %s204 = scalar_lea.vmem %s2, %s203
        $region28: #{encoder_layer.5} parent=15 // pred_fallthru
          _
      $region16: #{encoder_layer.5} parent=5 // pred_fallthru
        _
      %p205 = scmp.le.s32.totalorder 1, %s14
      %p206 = scmp.lt.s32.totalorder %s14, 9
      %p207 = pnand %p205, %p206
      %p208 = pneg %p207
      // Predicated region
      $region29: #{encoder_layer.5} parent=5 // pred_check
        _
      $region30: #{encoder_layer.5} parent=5 // pred_check_branch
        %210 = sbr.rel (%p207) target = $region32
      $region31: #{encoder_layer.5} parent=5 // pred_region
        %s211 = ssub.s32 %s14, 1
        %p212 = scmp.lt.s32.totalorder %s23, 7
        %s213 = scalar_select %p212, %s23, 7
        %p214 = scmp.lt.s32.totalorder %s24, 0
        %s215 = scalar_select %p214, %s24, 0
        %s216 = sadd.s32 %s215, %s213
        %s217 = smul.addr %s216, 4
        %s218 = scalar_lea.vmem %s0, %s217
        %p219 = pneg %p54
        %p220 = pneg %p51
        %p221 = scmp.lt.s32.totalorder %s23, 7
        %s222 = scalar_select %p221, %s23, 7
        %s223 = smul.addr %s222, 4
        %s224 = scalar_lea.vmem %s1, %s223
        %p225 = pneg %p80
        %p226 = pneg %p77
        %p227 = scmp.lt.s32.totalorder %s23, 7
        %s228 = scalar_select %p227, %s23, 7
        %s229 = smul.addr %s228, 4
        %s230 = scalar_lea.vmem %s2, %s229
        %p231 = pneg %p106
        %p232 = pneg %p103
        %p233 = pneg %p134
        %p234 = pneg %p131
        %p235 = scmp.lt.s32.totalorder %s23, 7
        %s236 = scalar_select %p235, %s23, 7
        %p237 = scmp.lt.s32.totalorder %s24, 0
        %s238 = scalar_select %p237, %s24, 0
        %s239 = sadd.s32 %s238, %s236
        %s240 = smul.addr %s239, 4
        %s241 = scalar_lea.vmem %s3, %s240
        %p242 = pneg %p162
        %p243 = pneg %p159
        %s244 = sand.u32 %s149, 1
        %s245 = scalar_lea.sflag [#allocation3], %s244
        %s246 = sand.u32 %s149, 1
        %s247 = smul.addr %s246, 8
        %s248 = scalar_lea.vmem [#allocation2], %s247
        %p249 = scmp.lt.s32.totalorder %s23, 7
        %s250 = scalar_select %p249, %s23, 7
        %p251 = scmp.lt.s32.totalorder %s24, 0
        %s252 = scalar_select %p251, %s24, 0
        %s253 = sadd.s32 %s252, %s250
        %s254 = smul.addr %s253, 4
        %s255 = scalar_lea.vmem %s0, %s254
        %p256 = scmp.lt.s32.totalorder %s23, 7
        %s257 = scalar_select %p256, %s23, 7
        %s258 = smul.addr %s257, 4
        %s259 = scalar_lea.vmem %s1, %s258
        %p260 = scmp.lt.s32.totalorder %s23, 7
        %s261 = scalar_select %p260, %s23, 7
        %s262 = smul.addr %s261, 4
        %s263 = scalar_lea.vmem %s2, %s262
        %p264 = scmp.lt.s32.totalorder %s23, 7
        %s265 = scalar_select %p264, %s23, 7
        %p266 = scmp.lt.s32.totalorder %s24, 0
        %s267 = scalar_select %p266, %s24, 0
        %s268 = sadd.s32 %s267, %s265
        %s269 = smul.addr %s268, 4
        %s270 = scalar_lea.vmem %s3, %s269
        %v272 = vld [vmem:[%s255] sm:$0xf]
        %v273 = vld [vmem:[%s259] sm:$0xf]
        %vm274 = vcmask 64512
        %v276 = vsel %vm274, %v272, 0
        %v279 = vsel %vm274, %v273, 0
        %281 = vmatprep.subr.bf16.mxu0 0
        %282 = vmatpush1.bf16.xpose.msra.mxu0 0
        %283 = vmatprep.subr.bf16.mxu0 0
        %284 = vmatpush1.bf16.xpose.msra.mxu0 0
        %285 = vmatprep.subr.bf16.mxu0 0
        %286 = vmatpush1.bf16.xpose.msra.mxu0 0
        %287 = vmatprep.subr.bf16.mxu0 0
        %288 = vmatpush1.bf16.xpose.msra.mxu0 0
        %289 = vmatprep.subr.bf16.mxu0 0
        %290 = vmatpush1.bf16.xpose.msra.mxu0 0
        %291 = vmatprep.subr.bf16.mxu0 0
        %292 = vmatpush1.bf16.xpose.msra.mxu0 0
        %293 = vmatprep.subr.bf16.mxu0 0
        %294 = vmatpush1.bf16.xpose.msra.mxu0 0
        %295 = vmatprep.subr.bf16.mxu0 0
        %296 = vmatpush1.bf16.xpose.msra.mxu0 %v279
        %297 = vmatprep.subr.bf16.mxu0 0
        %298 = vmatpush2.bf16.xpose.msra.mxu0 0
        %299 = vmatprep.subr.bf16.mxu0 0
        %300 = vmatpush2.bf16.xpose.msra.mxu0 0
        %301 = vmatprep.subr.bf16.mxu0 0
        %302 = vmatpush2.bf16.xpose.msra.mxu0 0
        %303 = vmatprep.subr.bf16.mxu0 0
        %304 = vmatpush2.bf16.xpose.msra.mxu0 0
        %305 = vmatprep.subr.bf16.mxu0 0
        %306 = vmatpush2.bf16.xpose.msra.mxu0 0
        %307 = vmatprep.subr.bf16.mxu0 0
        %308 = vmatpush2.bf16.xpose.msra.mxu0 0
        %309 = vmatprep.subr.bf16.mxu0 0
        %310 = vmatpush2.bf16.xpose.msra.mxu0 0
        %311 = vmatprep.subr.bf16.mxu0 0
        %312 = vmatpush2.bf16.xpose.msra.mxu0 0
        %313 = vmatprep.mubr.bf16.mxu0 0
        %314 = vmatmul.mubr.bf16.gmra.mxu0 %v276
        %v315 = vpop.f32.mrf.mxu0
        %v316 = vadd.f32 0.0, %v315
        %v317 = vpop.f32.mrf.mxu0
        %v318 = vpop.f32.mrf.mxu0
        %v319 = vpop.f32.mrf.mxu0
        %320 = vdwg.mxu0
        %v321 = vmul.f32 %v316, 0.35355338
        %v322 = vsel %vm274, %v321, -inf
        %323 = vmax.xlane.f32.xlu0 %v322
        %v324 = vpop.xlane.xlu0 %323
        %v325 = vsub.f32 %v321, %v324
        %v326 = vmul.f32 %v325, 1.442695
        %v327 = vpow.pop %v326
        %v328 = vsel %vm274, %v327, 0.0
        %329 = vadd.xlane.f32.xlu0 %v328
        %v330 = vpop.xlane.xlu0 %329
        %v331 = vrcp.pop %v330
        %v332 = vmul.f32 %v330, %v331
        %v333 = vsub.f32 2.0, %v332
        %v334 = vmul.f32 %v331, %v333
        %v335 = vmul.f32 %v327, %v334
        %336 = vst.msk [vmem:[%s248] sm:$0xff] %vm274, %v335
        %v337 = vpack.c.bf16 %v335, %v335
        %v338 = vld [vmem:[%s263] sm:$0xf]
        %v340 = vsel %vm274, %v337, 0
        %vm342 = vcmask 1043456
        %v344 = vsel %vm342, %v338, 0
        %346 = vmatprep.subr.bf16.mxu0 0
        %347 = vmatpush1.bf16.msra.mxu0 0
        %348 = vmatprep.subr.bf16.mxu0 0
        %349 = vmatpush1.bf16.msra.mxu0 0
        %350 = vmatprep.subr.bf16.mxu0 0
        %351 = vmatpush1.bf16.msra.mxu0 0
        %352 = vmatprep.subr.bf16.mxu0 0
        %353 = vmatpush1.bf16.msra.mxu0 0
        %354 = vmatprep.subr.bf16.mxu0 0
        %355 = vmatpush1.bf16.msra.mxu0 0
        %356 = vmatprep.subr.bf16.mxu0 0
        %357 = vmatpush1.bf16.msra.mxu0 0
        %358 = vmatprep.subr.bf16.mxu0 0
        %359 = vmatpush1.bf16.msra.mxu0 0
        %360 = vmatprep.subr.bf16.mxu0 0
        %361 = vmatpush1.bf16.msra.mxu0 %v344
        %362 = vmatprep.subr.bf16.mxu0 0
        %363 = vmatpush2.bf16.msra.mxu0 0
        %364 = vmatprep.subr.bf16.mxu0 0
        %365 = vmatpush2.bf16.msra.mxu0 0
        %366 = vmatprep.subr.bf16.mxu0 0
        %367 = vmatpush2.bf16.msra.mxu0 0
        %368 = vmatprep.subr.bf16.mxu0 0
        %369 = vmatpush2.bf16.msra.mxu0 0
        %370 = vmatprep.subr.bf16.mxu0 0
        %371 = vmatpush2.bf16.msra.mxu0 0
        %372 = vmatprep.subr.bf16.mxu0 0
        %373 = vmatpush2.bf16.msra.mxu0 0
        %374 = vmatprep.subr.bf16.mxu0 0
        %375 = vmatpush2.bf16.msra.mxu0 0
        %376 = vmatprep.subr.bf16.mxu0 0
        %377 = vmatpush2.bf16.msra.mxu0 0
        %378 = vmatprep.mubr.bf16.mxu0 0
        %379 = vmatmul.mubr.bf16.gmra.mxu0 %v340
        %v380 = vpop.f32.mrf.mxu0
        %v381 = vadd.f32 0.0, %v380
        %v382 = vpop.f32.mrf.mxu0
        %v383 = vpop.f32.mrf.mxu0
        %v384 = vpop.f32.mrf.mxu0
        %385 = vdwg.mxu0
        %v386 = vpack.c.bf16 %v381, %v381
        %vm387 = vcmask 60416
        %388 = vst.msk [vmem:[%s270] sm:$0xf] %vm387, %v386
        %p389 = scmp.lt.s32.totalorder %s23, 7
        %s390 = scalar_select %p389, %s23, 7
        %p391 = scmp.lt.s32.totalorder %s24, 0
        %s392 = scalar_select %p391, %s24, 0
        %s393 = sadd.s32 %s392, %s390
        %s394 = smul.addr %s393, 4
        %s395 = scalar_lea.vmem %s3, %s394
        %s396 = sand.u32 %s149, 1
        %s397 = scalar_lea.sflag [#allocation3], %s396
        %s398 = sand.u32 %s149, 1
        %s399 = smul.addr %s398, 8
        %s400 = scalar_lea.vmem [#allocation2], %s399
        // Predicated region
        $region33: #{encoder_layer.5} parent=31 // pred_check
          %p401 = pneg %p131
        $region34: #{encoder_layer.5} parent=31 // pred_check_branch
          %403 = sbr.rel (%p401) target = $region36
        $region35: #{encoder_layer.5} parent=31 // pred_region
          _
        $region36: #{encoder_layer.5} parent=31 // pred_fallthru
          _
        // Predicated region
        $region37: #{encoder_layer.5} parent=31 // pred_check
          %p404 = pneg %p159
        $region38: #{encoder_layer.5} parent=31 // pred_check_branch
          %406 = sbr.rel (%p404) target = $region40
        $region39: #{encoder_layer.5} parent=31 // pred_region
          %s408 = ssub.s32 128, 128
          %409 = vsyncadd %s397, %s408
          %s410 = sadd.s32 %s24, %s23
          %s411 = smul.addr %s410, 128
          %s412 = scalar_lea.hbm %s4, %s411
          %s414 = sshll.u32 %s400, 4
          %s415 = int_to_ptr.vmem [resolvable:$true] %s414
          %417 = dma.vmem_to_hbm [thread:$0]  %s415, 128, %s412, %s397
        $region40: #{encoder_layer.5} parent=31 // pred_fallthru
          _
      $region32: #{encoder_layer.5} parent=5 // pred_fallthru
        _
      %p418 = scmp.le.s32.totalorder 2, %s14
      // Predicated region
      $region41: #{encoder_layer.5} parent=5 // pred_check
        %p419 = pneg %p418
      $region42: #{encoder_layer.5} parent=5 // pred_check_branch
        %421 = sbr.rel (%p419) target = $region44
      $region43: #{encoder_layer.5} parent=5 // pred_region
        %s422 = ssub.s32 %s14, 2
        // Predicated region
        $region45: #{encoder_layer.5} parent=43 // pred_check
          %p423 = pneg %p137
        $region46: #{encoder_layer.5} parent=43 // pred_check_branch
          %425 = sbr.rel (%p423) target = $region48
        $region47: #{encoder_layer.5} parent=43 // pred_region
          %p426 = scmp.lt.s32.totalorder %s25, 7
          %s427 = scalar_select %p426, %s25, 7
          %p428 = scmp.lt.s32.totalorder %s26, 0
          %s429 = scalar_select %p428, %s26, 0
          %s430 = sadd.s32 %s429, %s427
          %s431 = smul.addr %s430, 4
          %s432 = scalar_lea.vmem %s3, %s431
        $region48: #{encoder_layer.5} parent=43 // pred_fallthru
          _
        // Predicated region
        $region49: #{encoder_layer.5} parent=43 // pred_check
          %p433 = pneg %p165
        $region50: #{encoder_layer.5} parent=43 // pred_check_branch
          %435 = sbr.rel (%p433) target = $region52
        $region51: #{encoder_layer.5} parent=43 // pred_region
          %s436 = sand.u32 %s150, 1
          %s437 = scalar_lea.sflag [#allocation3], %s436
          %s438 = sand.u32 %s150, 1
          %s439 = smul.addr %s438, 8
          %s440 = scalar_lea.vmem [#allocation2], %s439
          %441 = dma.done %s437, 128
        $region52: #{encoder_layer.5} parent=43 // pred_fallthru
          _
      $region44: #{encoder_layer.5} parent=5 // pred_fallthru
        _
    $region6: #{encoder_layer.5} parent=1 // loop_footer
      %s18 = sadd.s32 1, %s14
    $region7: #{encoder_layer.5} parent=1 // loop_footer_branch
      %13 = sbr.rel target = $region3
    $region8: #{encoder_layer.5} parent=1 // loop_exit
      _
    %442 = vsyncpa [#allocation3], 1
    %s443 = scalar_lea.sflag [#allocation3], 1
    %444 = vsyncpa %s443, 1

// kernel: encoder_layer.6
$region0: #{encoder_layer.6}
  #allocation0 [shape = 'u32[]', space=smem, size = 0x4, offset = 0x4, fixed_abs, tag = 'smem constant byte address 0x4 - core index']
  #allocation1 [shape = 'u32[144,128]{1,0:T(1,128)}', space=vmem, size = 0x12000, scoped, tag = 'internal scratch']
  #allocation2 [shape = 'f32[16,32]{1,0:T(8,128)}', space=vmem, size = 0x2000, scoped, tag = 'scratch operand']
  %s0 = inlined_call_operand.vmem [shape: bf16[16,32], index: 0, kind: input, shape index: {}]
  %s1 = inlined_call_operand.vmem [shape: bf16[32,32], index: 1, kind: input, shape index: {}]
  %s2 = inlined_call_operand.vmem [shape: f32[1,32], index: 2, kind: input, shape index: {}]
  %s3 = inlined_call_operand.vmem [shape: f32[16,32], index: 3, kind: input, shape index: {}]
  %s4 = inlined_call_operand.vmem [shape: f32[1,32], index: 4, kind: input, shape index: {}]
  %s5 = inlined_call_operand.vmem [shape: f32[1,32], index: 5, kind: input, shape index: {}]
  %s6 = inlined_call_operand.vmem [shape: f32[16,32], index: 6, kind: output, shape index: {}]
  %s7 = sld [smem:[#allocation0]]
  $region42: #{encoder_layer.6} parent=0
    _
  %s9 = ssub.s32 1, %s7
  %s10 = scalar_select 0, %s9, %s7
  // Predicated region
  $region2: #{encoder_layer.6} parent=0 // pred_check
    _
  $region3: #{encoder_layer.6} parent=0 // pred_check_branch
    %12 = sbr.rel (0) target = $region5
  $region4: #{encoder_layer.6} parent=0 // pred_region
    _
  $region5: #{encoder_layer.6} parent=0 // pred_fallthru
    _
  // Predicated region
  $region6: #{encoder_layer.6} parent=0 // pred_check
    _
  $region7: #{encoder_layer.6} parent=0 // pred_check_branch
    %14 = sbr.rel (0) target = $region9
  $region8: #{encoder_layer.6} parent=0 // pred_region
    _
  $region9: #{encoder_layer.6} parent=0 // pred_fallthru
    _
  // Predicated region
  $region10: #{encoder_layer.6} parent=0 // pred_check
    _
  $region11: #{encoder_layer.6} parent=0 // pred_check_branch
    %16 = sbr.rel (0) target = $region13
  $region12: #{encoder_layer.6} parent=0 // pred_region
    _
  $region13: #{encoder_layer.6} parent=0 // pred_fallthru
    _
  // Predicated region
  $region14: #{encoder_layer.6} parent=0 // pred_check
    _
  $region15: #{encoder_layer.6} parent=0 // pred_check_branch
    %18 = sbr.rel (0) target = $region17
  $region16: #{encoder_layer.6} parent=0 // pred_region
    _
  $region17: #{encoder_layer.6} parent=0 // pred_fallthru
    _
  // Predicated region
  $region18: #{encoder_layer.6} parent=0 // pred_check
    _
  $region19: #{encoder_layer.6} parent=0 // pred_check_branch
    %20 = sbr.rel (0) target = $region21
  $region20: #{encoder_layer.6} parent=0 // pred_region
    _
  $region21: #{encoder_layer.6} parent=0 // pred_fallthru
    _
  // Predicated region
  $region22: #{encoder_layer.6} parent=0 // pred_check
    _
  $region23: #{encoder_layer.6} parent=0 // pred_check_branch
    %22 = sbr.rel (0) target = $region25
  $region24: #{encoder_layer.6} parent=0 // pred_region
    _
  $region25: #{encoder_layer.6} parent=0 // pred_fallthru
    _
  %p24 = scmp.eq.s32.totalorder 0, 0
  // Predicated region
  $region26: #{encoder_layer.6} parent=0 // pred_check
    %p25 = pneg %p24
  $region27: #{encoder_layer.6} parent=0 // pred_check_branch
    %27 = sbr.rel (%p25) target = $region29
  $region28: #{encoder_layer.6} parent=0 // pred_region
    %vm28 = vcmask 261120
    %29 = vst.msk [vmem:[#allocation2] sm:$0xff] %vm28, 0.0
    %30 = vst.msk [vmem:[#allocation2 + $0x8] sm:$0xff] %vm28, 0.0
  $region29: #{encoder_layer.6} parent=0 // pred_fallthru
    _
  %v31 = vld [vmem:[#allocation2] sm:$0xff]
  %v32 = vld [vmem:[#allocation2 + $0x8] sm:$0xff]
  %v33 = vld [vmem:[%s0] sm:$0xf]
  %v34 = vld [vmem:[%s0 + $0x4] sm:$0xf]
  %v35 = vld [vmem:[%s1] sm:$0xf]
  %v36 = vld [vmem:[%s1 + $0x4] sm:$0xf]
  %v37 = vld [vmem:[%s1 + $0x8] sm:$0xf]
  %v38 = vld [vmem:[%s1 + $0xc] sm:$0xf]
  %v41 = vunpack.c.l.b16 %v33
  %v42 = vunpack.c.l.b16 %v34
  %v43 = vpack.c.b16 %v42, %v41
  %v48 = vunpack.c.l.b16 %v35
  %v49 = vunpack.c.l.b16 %v36
  %v50 = vunpack.c.l.b16 %v37
  %v51 = vunpack.c.l.b16 %v38
  %v52 = vpack.c.b16 %v49, %v48
  %v53 = vpack.c.b16 %v51, %v50
  %vm56 = vcmask 261120
  %v58 = vsel %vm56, %v43, 0
  %60 = vmatprep.subr.bf16.mxu0 0
  %61 = vmatpush1.bf16.msra.mxu0 0
  %62 = vmatprep.subr.bf16.mxu0 0
  %63 = vmatpush1.bf16.msra.mxu0 0
  %64 = vmatprep.subr.bf16.mxu0 0
  %65 = vmatpush1.bf16.msra.mxu0 0
  %66 = vmatprep.subr.bf16.mxu0 0
  %67 = vmatpush1.bf16.msra.mxu0 0
  %68 = vmatprep.subr.bf16.mxu0 0
  %69 = vmatpush1.bf16.msra.mxu0 0
  %70 = vmatprep.subr.bf16.mxu0 0
  %71 = vmatpush1.bf16.msra.mxu0 0
  %72 = vmatprep.subr.bf16.mxu0 0
  %73 = vmatpush1.bf16.msra.mxu0 %v53
  %74 = vmatprep.subr.bf16.mxu0 0
  %75 = vmatpush1.bf16.msra.mxu0 %v52
  %76 = vmatprep.subr.bf16.mxu0 0
  %77 = vmatpush2.bf16.msra.mxu0 0
  %78 = vmatprep.subr.bf16.mxu0 0
  %79 = vmatpush2.bf16.msra.mxu0 0
  %80 = vmatprep.subr.bf16.mxu0 0
  %81 = vmatpush2.bf16.msra.mxu0 0
  %82 = vmatprep.subr.bf16.mxu0 0
  %83 = vmatpush2.bf16.msra.mxu0 0
  %84 = vmatprep.subr.bf16.mxu0 0
  %85 = vmatpush2.bf16.msra.mxu0 0
  %86 = vmatprep.subr.bf16.mxu0 0
  %87 = vmatpush2.bf16.msra.mxu0 0
  %88 = vmatprep.subr.bf16.mxu0 0
  %89 = vmatpush2.bf16.msra.mxu0 0
  %90 = vmatprep.subr.bf16.mxu0 0
  %91 = vmatpush2.bf16.msra.mxu0 0
  %92 = vmatprep.mubr.bf16.mxu0 0
  %93 = vmatmul.mubr.bf16.gmra.mxu0 %v58
  %v94 = vpop.f32.mrf.mxu0
  %v95 = vadd.f32 0.0, %v94
  %v96 = vpop.f32.mrf.mxu0
  %v97 = vpop.f32.mrf.mxu0
  %v98 = vadd.f32 0.0, %v97
  %v99 = vpop.f32.mrf.mxu0
  %100 = vdwg.mxu0
  %v101 = vadd.f32 %v31, %v95
  %v102 = vadd.f32 %v32, %v98
  %103 = vst.msk [vmem:[#allocation2] sm:$0xff] %vm56, %v101
  %104 = vst.msk [vmem:[#allocation2 + $0x8] sm:$0xff] %vm56, %v102
  // Predicated region
  $region30: #{encoder_layer.6} parent=0 // pred_check
    %p105 = pneg %p24
  $region31: #{encoder_layer.6} parent=0 // pred_check_branch
    %107 = sbr.rel (%p105) target = $region33
  $region32: #{encoder_layer.6} parent=0 // pred_region
    %v108 = vld [vmem:[#allocation2] sm:$0xff]
    %v109 = vld [vmem:[#allocation2 + $0x8] sm:$0xff]
    %v110 = vld [vmem:[%s2] sm:$0x1]
    %v112 = vlaneseq
    %v113 = vshrl.u32 %v112, 7
    %v114 = vsub.s32 0, %v113
    %v115 = vrot.slane %v110, %v114
    %v117 = vadd.f32 %v108, %v115
    %v118 = vadd.f32 %v109, %v115
    %v119 = vld [vmem:[%s3] sm:$0xff]
    %v120 = vld [vmem:[%s3 + $0x8] sm:$0xff]
    %v121 = vadd.f32 %v117, %v119
    %v122 = vadd.f32 %v118, %v120
    %v123 = vsel %vm56, %v121, 0.0
    %124 = vadd.xlane.f32.xlu0 %v123
    %v125 = vpop.xlane.xlu0 %124
    %v126 = vsel %vm56, %v122, 0.0
    %127 = vadd.xlane.f32.xlu0 %v126
    %v128 = vpop.xlane.xlu0 %127
    %v129 = vrcp.pop 32.0
    %v130 = vmul.f32 %v125, %v129
    %v131 = vmul.f32 %v128, %v129
    %v132 = vsub.f32 %v121, %v130
    %v133 = vsub.f32 %v122, %v131
    %v134 = vmul.f32 %v132, %v132
    %v135 = vmul.f32 %v133, %v133
    %v136 = vsel %vm56, %v134, 0.0
    %137 = vadd.xlane.f32.xlu0 %v136
    %v138 = vpop.xlane.xlu0 %137
    %v139 = vsel %vm56, %v135, 0.0
    %140 = vadd.xlane.f32.xlu0 %v139
    %v141 = vpop.xlane.xlu0 %140
    %v142 = vmul.f32 %v138, %v129
    %v143 = vmul.f32 %v141, %v129
    %v144 = vadd.f32 %v142, 1e-06
    %v145 = vadd.f32 %v143, 1e-06
    %v146 = vrsqrt.pop %v144
    %v147 = vrsqrt.pop %v145
    %v148 = vmul.f32 %v132, %v146
    %v149 = vmul.f32 %v133, %v147
    %v150 = vld [vmem:[%s4] sm:$0x1]
    %v152 = vlaneseq
    %v153 = vshrl.u32 %v152, 7
    %v154 = vsub.s32 0, %v153
    %v155 = vrot.slane %v150, %v154
    %v157 = vmul.f32 %v148, %v155
    %v158 = vmul.f32 %v149, %v155
    %v159 = vld [vmem:[%s5] sm:$0x1]
    %v161 = vlaneseq
    %v162 = vshrl.u32 %v161, 7
    %v163 = vsub.s32 0, %v162
    %v164 = vrot.slane %v159, %v163
    %v166 = vadd.f32 %v157, %v164
    %v167 = vadd.f32 %v158, %v164
    %168 = vst.msk [vmem:[%s6] sm:$0xff] %vm56, %v166
    %169 = vst.msk [vmem:[%s6 + $0x8] sm:$0xff] %vm56, %v167
  $region33: #{encoder_layer.6} parent=0 // pred_fallthru
    _
  // Predicated region
  $region34: #{encoder_layer.6} parent=0 // pred_check
    _
  $region35: #{encoder_layer.6} parent=0 // pred_check_branch
    %171 = sbr.rel (0) target = $region37
  $region36: #{encoder_layer.6} parent=0 // pred_region
    _
  $region37: #{encoder_layer.6} parent=0 // pred_fallthru
    _
  // Predicated region
  $region38: #{encoder_layer.6} parent=0 // pred_check
    _
  $region39: #{encoder_layer.6} parent=0 // pred_check_branch
    %173 = sbr.rel (0) target = $region41
  $region40: #{encoder_layer.6} parent=0 // pred_region
    _
  $region41: #{encoder_layer.6} parent=0 // pred_fallthru
    _

// kernel: encoder_layer.7
$region0: #{encoder_layer.7}
  #allocation0 [shape = 'u32[]', space=smem, size = 0x4, offset = 0x4, fixed_abs, tag = 'smem constant byte address 0x4 - core index']
  #allocation1 [shape = 'u32[144,128]{1,0:T(1,128)}', space=vmem, size = 0x12000, scoped, tag = 'internal scratch']
  #allocation2 [shape = 'f32[16,32]{1,0:T(8,128)}', space=vmem, size = 0x2000, scoped, tag = 'scratch operand']
  %s0 = inlined_call_operand.vmem [shape: f32[16,32], index: 0, kind: input, shape index: {}]
  %s1 = inlined_call_operand.vmem [shape: bf16[32,64], index: 1, kind: input, shape index: {}]
  %s2 = inlined_call_operand.vmem [shape: f32[1,64], index: 2, kind: input, shape index: {}]
  %s3 = inlined_call_operand.vmem [shape: bf16[64,32], index: 3, kind: input, shape index: {}]
  %s4 = inlined_call_operand.vmem [shape: f32[1,32], index: 4, kind: input, shape index: {}]
  %s5 = inlined_call_operand.vmem [shape: f32[1,32], index: 5, kind: input, shape index: {}]
  %s6 = inlined_call_operand.vmem [shape: f32[1,32], index: 6, kind: input, shape index: {}]
  %s7 = inlined_call_operand.hbm [shape: f32[16,32], index: 7, kind: output, shape index: {}]
  %s8 = sld [smem:[#allocation0]]
  $region46: #{encoder_layer.7} parent=0
    _
  %s10 = ssub.s32 1, %s8
  %s11 = scalar_select 0, %s10, %s8
  $region1: #{encoder_layer.7} parent=0
    #allocation3 [shape = 'u8[8192]{0}', space=vmem, size = 0x2000, scoped, tag = 'output window, operand 0, single buffered']
    #allocation4 [shape = 's32[1]{0}', space=sflag, size = 0x4, scoped, tag = 'scoped memory for encoder_layer.7']
    %12 = vsyncpa [#allocation4], 0
    // Predicated region
    $region2: #{encoder_layer.7} parent=1 // pred_check
      _
    $region3: #{encoder_layer.7} parent=1 // pred_check_branch
      %14 = sbr.rel (0) target = $region5
    $region4: #{encoder_layer.7} parent=1 // pred_region
      _
    $region5: #{encoder_layer.7} parent=1 // pred_fallthru
      _
    // Predicated region
    $region6: #{encoder_layer.7} parent=1 // pred_check
      _
    $region7: #{encoder_layer.7} parent=1 // pred_check_branch
      %16 = sbr.rel (0) target = $region9
    $region8: #{encoder_layer.7} parent=1 // pred_region
      _
    $region9: #{encoder_layer.7} parent=1 // pred_fallthru
      _
    // Predicated region
    $region10: #{encoder_layer.7} parent=1 // pred_check
      _
    $region11: #{encoder_layer.7} parent=1 // pred_check_branch
      %18 = sbr.rel (0) target = $region13
    $region12: #{encoder_layer.7} parent=1 // pred_region
      _
    $region13: #{encoder_layer.7} parent=1 // pred_fallthru
      _
    // Predicated region
    $region14: #{encoder_layer.7} parent=1 // pred_check
      _
    $region15: #{encoder_layer.7} parent=1 // pred_check_branch
      %20 = sbr.rel (0) target = $region17
    $region16: #{encoder_layer.7} parent=1 // pred_region
      _
    $region17: #{encoder_layer.7} parent=1 // pred_fallthru
      _
    // Predicated region
    $region18: #{encoder_layer.7} parent=1 // pred_check
      _
    $region19: #{encoder_layer.7} parent=1 // pred_check_branch
      %22 = sbr.rel (0) target = $region21
    $region20: #{encoder_layer.7} parent=1 // pred_region
      _
    $region21: #{encoder_layer.7} parent=1 // pred_fallthru
      _
    // Predicated region
    $region22: #{encoder_layer.7} parent=1 // pred_check
      _
    $region23: #{encoder_layer.7} parent=1 // pred_check_branch
      %24 = sbr.rel (0) target = $region25
    $region24: #{encoder_layer.7} parent=1 // pred_region
      _
    $region25: #{encoder_layer.7} parent=1 // pred_fallthru
      _
    // Predicated region
    $region26: #{encoder_layer.7} parent=1 // pred_check
      _
    $region27: #{encoder_layer.7} parent=1 // pred_check_branch
      %26 = sbr.rel (0) target = $region29
    $region28: #{encoder_layer.7} parent=1 // pred_region
      _
    $region29: #{encoder_layer.7} parent=1 // pred_fallthru
      _
    %p28 = scmp.eq.s32.totalorder 0, 0
    // Predicated region
    $region30: #{encoder_layer.7} parent=1 // pred_check
      %p29 = pneg %p28
    $region31: #{encoder_layer.7} parent=1 // pred_check_branch
      %31 = sbr.rel (%p29) target = $region33
    $region32: #{encoder_layer.7} parent=1 // pred_region
      %vm32 = vcmask 261120
      %33 = vst.msk [vmem:[#allocation2] sm:$0xff] %vm32, 0.0
      %34 = vst.msk [vmem:[#allocation2 + $0x8] sm:$0xff] %vm32, 0.0
    $region33: #{encoder_layer.7} parent=1 // pred_fallthru
      _
    %v35 = vld [vmem:[%s0] sm:$0xff]
    %v36 = vld [vmem:[%s0 + $0x8] sm:$0xff]
    %v37 = vpack.c.bf16 %v36, %v35
    %v38 = vld [vmem:[%s1] sm:$0xf]
    %v39 = vld [vmem:[%s1 + $0x4] sm:$0xf]
    %v40 = vld [vmem:[%s1 + $0x8] sm:$0xf]
    %v41 = vld [vmem:[%s1 + $0xc] sm:$0xf]
    %v42 = vld [vmem:[%s2] sm:$0x1]
    %v44 = vlaneseq
    %v45 = vshrl.u32 %v44, 7
    %v46 = vsub.s32 0, %v45
    %v47 = vrot.slane %v42, %v46
    %v53 = vunpack.c.l.b16 %v38
    %v54 = vunpack.c.l.b16 %v39
    %v55 = vunpack.c.l.b16 %v40
    %v56 = vunpack.c.l.b16 %v41
    %v57 = vpack.c.b16 %v54, %v53
    %v58 = vpack.c.b16 %v56, %v55
    %vm61 = vcmask 261120
    %v63 = vsel %vm61, %v37, 0
    %65 = vmatprep.subr.bf16.mxu0 0
    %66 = vmatpush1.bf16.msra.mxu0 0
    %67 = vmatprep.subr.bf16.mxu0 0
    %68 = vmatpush1.bf16.msra.mxu0 0
    %69 = vmatprep.subr.bf16.mxu0 0
    %70 = vmatpush1.bf16.msra.mxu0 0
    %71 = vmatprep.subr.bf16.mxu0 0
    %72 = vmatpush1.bf16.msra.mxu0 0
    %73 = vmatprep.subr.bf16.mxu0 0
    %74 = vmatpush1.bf16.msra.mxu0 0
    %75 = vmatprep.subr.bf16.mxu0 0
    %76 = vmatpush1.bf16.msra.mxu0 0
    %77 = vmatprep.subr.bf16.mxu0 0
    %78 = vmatpush1.bf16.msra.mxu0 %v58
    %79 = vmatprep.subr.bf16.mxu0 0
    %80 = vmatpush1.bf16.msra.mxu0 %v57
    %81 = vmatprep.subr.bf16.mxu0 0
    %82 = vmatpush2.bf16.msra.mxu0 0
    %83 = vmatprep.subr.bf16.mxu0 0
    %84 = vmatpush2.bf16.msra.mxu0 0
    %85 = vmatprep.subr.bf16.mxu0 0
    %86 = vmatpush2.bf16.msra.mxu0 0
    %87 = vmatprep.subr.bf16.mxu0 0
    %88 = vmatpush2.bf16.msra.mxu0 0
    %89 = vmatprep.subr.bf16.mxu0 0
    %90 = vmatpush2.bf16.msra.mxu0 0
    %91 = vmatprep.subr.bf16.mxu0 0
    %92 = vmatpush2.bf16.msra.mxu0 0
    %93 = vmatprep.subr.bf16.mxu0 0
    %94 = vmatpush2.bf16.msra.mxu0 0
    %95 = vmatprep.subr.bf16.mxu0 0
    %96 = vmatpush2.bf16.msra.mxu0 0
    %97 = vmatprep.mubr.bf16.mxu0 0
    %98 = vmatmul.mubr.bf16.gmra.mxu0 %v63
    %v99 = vpop.f32.mrf.mxu0
    %v100 = vadd.f32 %v47, %v99
    %v101 = vpop.f32.mrf.mxu0
    %v102 = vpop.f32.mrf.mxu0
    %v103 = vadd.f32 %v47, %v102
    %v104 = vpop.f32.mrf.mxu0
    %105 = vdwg.mxu0
    %v106 = vmax.f32 %v100, 0.0
    %v107 = vmax.f32 %v103, 0.0
    %v108 = vld [vmem:[#allocation2] sm:$0xff]
    %v109 = vld [vmem:[#allocation2 + $0x8] sm:$0xff]
    %v110 = vpack.c.bf16 %v107, %v106
    %v111 = vld [vmem:[%s3] sm:$0xf]
    %v112 = vld [vmem:[%s3 + $0x4] sm:$0xf]
    %v113 = vld [vmem:[%s3 + $0x8] sm:$0xf]
    %v114 = vld [vmem:[%s3 + $0xc] sm:$0xf]
    %v115 = vld [vmem:[%s3 + $0x10] sm:$0xf]
    %v116 = vld [vmem:[%s3 + $0x14] sm:$0xf]
    %v117 = vld [vmem:[%s3 + $0x18] sm:$0xf]
    %v118 = vld [vmem:[%s3 + $0x1c] sm:$0xf]
    %v127 = vunpack.c.l.b16 %v111
    %v128 = vunpack.c.l.b16 %v112
    %v129 = vunpack.c.l.b16 %v113
    %v130 = vunpack.c.l.b16 %v114
    %v131 = vunpack.c.l.b16 %v115
    %v132 = vunpack.c.l.b16 %v116
    %v133 = vunpack.c.l.b16 %v117
    %v134 = vunpack.c.l.b16 %v118
    %v135 = vpack.c.b16 %v128, %v127
    %v136 = vpack.c.b16 %v130, %v129
    %v137 = vpack.c.b16 %v132, %v131
    %v138 = vpack.c.b16 %v134, %v133
    %vm143 = vcmask 523264
    %v145 = vsel %vm143, %v110, 0
    %147 = vmatprep.subr.bf16.mxu0 0
    %148 = vmatpush1.bf16.msra.mxu0 0
    %149 = vmatprep.subr.bf16.mxu0 0
    %150 = vmatpush1.bf16.msra.mxu0 0
    %151 = vmatprep.subr.bf16.mxu0 0
    %152 = vmatpush1.bf16.msra.mxu0 0
    %153 = vmatprep.subr.bf16.mxu0 0
    %154 = vmatpush1.bf16.msra.mxu0 0
    %155 = vmatprep.subr.bf16.mxu0 0
    %156 = vmatpush1.bf16.msra.mxu0 %v138
    %157 = vmatprep.subr.bf16.mxu0 0
    %158 = vmatpush1.bf16.msra.mxu0 %v137
    %159 = vmatprep.subr.bf16.mxu0 0
    %160 = vmatpush1.bf16.msra.mxu0 %v136
    %161 = vmatprep.subr.bf16.mxu0 0
    %162 = vmatpush1.bf16.msra.mxu0 %v135
    %163 = vmatprep.subr.bf16.mxu0 0
    %164 = vmatpush2.bf16.msra.mxu0 0
    %165 = vmatprep.subr.bf16.mxu0 0
    %166 = vmatpush2.bf16.msra.mxu0 0
    %167 = vmatprep.subr.bf16.mxu0 0
    %168 = vmatpush2.bf16.msra.mxu0 0
    %169 = vmatprep.subr.bf16.mxu0 0
    %170 = vmatpush2.bf16.msra.mxu0 0
    %171 = vmatprep.subr.bf16.mxu0 0
    %172 = vmatpush2.bf16.msra.mxu0 0
    %173 = vmatprep.subr.bf16.mxu0 0
    %174 = vmatpush2.bf16.msra.mxu0 0
    %175 = vmatprep.subr.bf16.mxu0 0
    %176 = vmatpush2.bf16.msra.mxu0 0
    %177 = vmatprep.subr.bf16.mxu0 0
    %178 = vmatpush2.bf16.msra.mxu0 0
    %179 = vmatprep.mubr.bf16.mxu0 0
    %180 = vmatmul.mubr.bf16.gmra.mxu0 %v145
    %v181 = vpop.f32.mrf.mxu0
    %v182 = vadd.f32 0.0, %v181
    %v183 = vpop.f32.mrf.mxu0
    %v184 = vpop.f32.mrf.mxu0
    %v185 = vadd.f32 0.0, %v184
    %v186 = vpop.f32.mrf.mxu0
    %187 = vdwg.mxu0
    %v188 = vadd.f32 %v108, %v182
    %v189 = vadd.f32 %v109, %v185
    %190 = vst.msk [vmem:[#allocation2] sm:$0xff] %vm61, %v188
    %191 = vst.msk [vmem:[#allocation2 + $0x8] sm:$0xff] %vm61, %v189
    // Predicated region
    $region34: #{encoder_layer.7} parent=1 // pred_check
      %p192 = pneg %p28
    $region35: #{encoder_layer.7} parent=1 // pred_check_branch
      %194 = sbr.rel (%p192) target = $region37
    $region36: #{encoder_layer.7} parent=1 // pred_region
      %v195 = vld [vmem:[#allocation2] sm:$0xff]
      %v196 = vld [vmem:[#allocation2 + $0x8] sm:$0xff]
      %v197 = vld [vmem:[%s4] sm:$0x1]
      %v199 = vlaneseq
      %v200 = vshrl.u32 %v199, 7
      %v201 = vsub.s32 0, %v200
      %v202 = vrot.slane %v197, %v201
      %v204 = vadd.f32 %v195, %v202
      %v205 = vadd.f32 %v196, %v202
      %v206 = vadd.f32 %v204, %v35
      %v207 = vadd.f32 %v205, %v36
      %v208 = vsel %vm61, %v206, 0.0
      %209 = vadd.xlane.f32.xlu0 %v208
      %v210 = vpop.xlane.xlu0 %209
      %v211 = vsel %vm61, %v207, 0.0
      %212 = vadd.xlane.f32.xlu0 %v211
      %v213 = vpop.xlane.xlu0 %212
      %v214 = vrcp.pop 32.0
      %v215 = vmul.f32 %v210, %v214
      %v216 = vmul.f32 %v213, %v214
      %v217 = vsub.f32 %v206, %v215
      %v218 = vsub.f32 %v207, %v216
      %v219 = vmul.f32 %v217, %v217
      %v220 = vmul.f32 %v218, %v218
      %v221 = vsel %vm61, %v219, 0.0
      %222 = vadd.xlane.f32.xlu0 %v221
      %v223 = vpop.xlane.xlu0 %222
      %v224 = vsel %vm61, %v220, 0.0
      %225 = vadd.xlane.f32.xlu0 %v224
      %v226 = vpop.xlane.xlu0 %225
      %v227 = vmul.f32 %v223, %v214
      %v228 = vmul.f32 %v226, %v214
      %v229 = vadd.f32 %v227, 1e-06
      %v230 = vadd.f32 %v228, 1e-06
      %v231 = vrsqrt.pop %v229
      %v232 = vrsqrt.pop %v230
      %v233 = vmul.f32 %v217, %v231
      %v234 = vmul.f32 %v218, %v232
      %v235 = vld [vmem:[%s5] sm:$0x1]
      %v237 = vlaneseq
      %v238 = vshrl.u32 %v237, 7
      %v239 = vsub.s32 0, %v238
      %v240 = vrot.slane %v235, %v239
      %v242 = vmul.f32 %v233, %v240
      %v243 = vmul.f32 %v234, %v240
      %v244 = vld [vmem:[%s6] sm:$0x1]
      %v246 = vlaneseq
      %v247 = vshrl.u32 %v246, 7
      %v248 = vsub.s32 0, %v247
      %v249 = vrot.slane %v244, %v248
      %v251 = vadd.f32 %v242, %v249
      %v252 = vadd.f32 %v243, %v249
      %253 = vst.msk [vmem:[#allocation3] sm:$0xff] %vm61, %v251
      %254 = vst.msk [vmem:[#allocation3 + $0x8] sm:$0xff] %vm61, %v252
    $region37: #{encoder_layer.7} parent=1 // pred_fallthru
      _
    // Predicated region
    $region38: #{encoder_layer.7} parent=1 // pred_check
      _
    $region39: #{encoder_layer.7} parent=1 // pred_check_branch
      %256 = sbr.rel (0) target = $region41
    $region40: #{encoder_layer.7} parent=1 // pred_region
      %s258 = ssub.s32 256, 256
      %259 = vsyncadd [#allocation4], %s258
      %s260 = sshll.u32 [#allocation3], 4
      %s261 = int_to_ptr.vmem [resolvable:$true] %s260
      %266 = dma.vmem_to_hbm [thread:$0]  %s261, 256, %s7, [#allocation4], 128, 128, 8
    $region41: #{encoder_layer.7} parent=1 // pred_fallthru
      _
    // Predicated region
    $region42: #{encoder_layer.7} parent=1 // pred_check
      _
    $region43: #{encoder_layer.7} parent=1 // pred_check_branch
      %268 = sbr.rel (0) target = $region45
    $region44: #{encoder_layer.7} parent=1 // pred_region
      %269 = dma.done [#allocation4], 256
    $region45: #{encoder_layer.7} parent=1 // pred_fallthru
      _
    %270 = vsyncpa [#allocation4], 1

</llo_original>
